<compile_context>
chip_gen: v7x
topology: tpu7x:2x2x1
jax: 0.10.0
libtpu: 0.0.40
codegen_flags: <defaults>
</compile_context>

<pallas_src>
import jax
import jax.numpy as jnp
from jax.experimental import pallas as pl
from jax.experimental.pallas import tpu as pltpu


def deepfm_kernel(bias_ref, idx_ref, m_ref, b1_ref, w2t_ref, b2_ref, w3t_ref,
                  out_ref):
    # bias_ref : (1, 1)        f32 SMEM   linear bias + MLP output bias
    # idx_ref  : (F, tb)       i32        field indices, batch in lanes
    # m_ref    : (R, F*Vp)     f32        fused stationary matrix, R = D+8+H1
    #                                     rows [0,D): table^T
    #                                     row  D    : lin_w - 0.5*||e||^2
    #                                     rows [D+1,D+8): zero padding
    #                                     rows [D+8,R): W1_f^T @ table^T
    # b1_ref   : (H1, 1) f32, w2t_ref: (H2, H1), b2_ref: (H2, 1), w3t_ref: (1, H2)
    # out_ref  : (1, 1, tb)    f32        sigmoid(linear + fm + deep)
    num_fields, tb = idx_ref.shape
    rows, fv = m_ref.shape
    hidden1 = b1_ref.shape[0]
    embed_dim = rows - 8 - hidden1
    v_pad = fv // num_fields

    idx = idx_ref[...]                                        # (F, tb) int32

    # Small (Vp, tb) iota built once; one compare per field, blocks stacked
    # along sublanes into the full-contraction one-hot (F*Vp, tb).
    viota = jax.lax.broadcasted_iota(jnp.int32, (v_pad, tb), 0)
    oh = jnp.concatenate(
        [(viota == idx[f:f + 1, :]).astype(jnp.float32)
         for f in range(num_fields)],
        axis=0)                                               # (F*Vp, tb)

    # One fused MXU matmul: gathers embeddings, linear/FM aux row and the
    # first MLP layer for ALL fields, summing over fields inside the
    # contraction (no per-field pop + VPU add).
    acc = jnp.dot(m_ref[...], oh,
                  preferred_element_type=jnp.float32)         # (R, tb)

    sum_vec = acc[0:embed_dim, :]                             # (D, tb)  sum_f e_f
    combo = acc[embed_dim:embed_dim + 1, :]                   # (1, tb)  lin - 0.5*sum||e||^2
    h1_pre = acc[embed_dim + 8:, :]                           # (H1, tb)

    power_of_sum = jnp.sum(sum_vec * sum_vec, axis=0, keepdims=True)  # (1, tb)

    # Deep (MLP) branch, biases broadcast along lanes; output bias folded
    # into bias_ref.
    h1 = jnp.maximum(h1_pre + b1_ref[...], 0.0)                           # (H1, tb)
    h2 = jnp.maximum(jnp.dot(w2t_ref[...], h1,
                             preferred_element_type=jnp.float32)
                     + b2_ref[...], 0.0)                                  # (H2, tb)
    deep = jnp.dot(w3t_ref[...], h2, preferred_element_type=jnp.float32)  # (1, tb)

    # logits = linear + fm + deep + bias
    #        = (lin - 0.5*sum_of_power) + 0.5*power_of_sum + deep + bias
    logits = combo + 0.5 * power_of_sum + deep + bias_ref[0, 0]
    out_ref[0] = jax.nn.sigmoid(logits)                                   # (1, tb)


def deepfm_forward(x_user, x_item, params, *, tb=512):
    """DeepFM forward.  Layout/weight plumbing in JAX, all per-sample compute
    in one Pallas kernel."""
    x = jnp.concatenate((x_user, x_item), axis=1).astype(jnp.int32)  # (B, F)
    batch, num_fields = x.shape

    table = params["embed_table"].astype(jnp.float32)                # (V, D)
    vocab, embed_dim = table.shape
    lin_w = params["linear_w"].astype(jnp.float32)                   # (V, 1)
    lin_b = params["linear_b"].astype(jnp.float32)                   # (1,)
    w1 = params["mlp_w1"].astype(jnp.float32)                        # (F*D, H1)
    b1 = params["mlp_b1"].astype(jnp.float32)                        # (H1,)
    w2 = params["mlp_w2"].astype(jnp.float32)                        # (H1, H2)
    b2 = params["mlp_b2"].astype(jnp.float32)                        # (H2,)
    w3 = params["mlp_w3"].astype(jnp.float32)                        # (H2, 1)
    b3 = params["mlp_b3"].astype(jnp.float32)                        # (1,)
    hidden1, hidden2 = w1.shape[1], w2.shape[1]

    assert tb % 128 == 0, "batch tile must be lane dense (multiple of 128)"
    b_pad = ((batch + tb - 1) // tb) * tb
    num_tiles = b_pad // tb

    v_pad = ((vocab + 127) // 128) * 128
    rows = embed_dim + 8 + hidden1                                   # 8-aligned aux pad

    # ---- wrapper-side layout / weight folding (per-parameter, not per-sample)
    idx_t = jnp.pad(x.T, ((0, 0), (0, b_pad - batch)))               # (F, B_pad)
    table_t = table.T                                                # (D, V)
    combo_row = lin_w[:, 0] - 0.5 * jnp.sum(table * table, axis=1)   # (V,)
    w1_r = w1.reshape(num_fields, embed_dim, hidden1)                # (F, D, H1)
    hp = jax.lax.Precision.HIGHEST
    pad7 = jnp.zeros((7, vocab), jnp.float32)
    blocks = []
    for f in range(num_fields):
        w1f_table = jnp.dot(table, w1_r[f], precision=hp).T          # (H1, V)
        mf = jnp.concatenate([table_t, combo_row[None, :], pad7, w1f_table],
                             axis=0)                                 # (R, V)
        blocks.append(jnp.pad(mf, ((0, 0), (0, v_pad - vocab))))     # (R, Vp)
    m_all = jnp.concatenate(blocks, axis=1)                          # (R, F*Vp)

    b1_c = b1.reshape(hidden1, 1)
    b2_c = b2.reshape(hidden2, 1)
    w2_t = w2.T                                                      # (H2, H1)
    w3_t = w3.T                                                      # (1, H2)
    bias_total = (lin_b[0] + b3[0]).reshape(1, 1).astype(jnp.float32)

    out = pl.pallas_call(
        deepfm_kernel,
        out_shape=jax.ShapeDtypeStruct((num_tiles, 1, tb), jnp.float32),
        grid_spec=pltpu.PrefetchScalarGridSpec(
            num_scalar_prefetch=0,
            grid=(num_tiles,),
            in_specs=[
                # scalar bias in SMEM
                pl.BlockSpec(memory_space=pltpu.MemorySpace.SMEM),
                # indices: batch in lanes, tiled over batch
                pl.BlockSpec((num_fields, tb), lambda i: (0, i)),
                # parameters: resident, constant block (index_map -> (0,0))
                pl.BlockSpec((rows, num_fields * v_pad), lambda i: (0, 0)),
                pl.BlockSpec((hidden1, 1), lambda i: (0, 0)),
                pl.BlockSpec((hidden2, hidden1), lambda i: (0, 0)),
                pl.BlockSpec((hidden2, 1), lambda i: (0, 0)),
                pl.BlockSpec((1, hidden2), lambda i: (0, 0)),
            ],
            out_specs=pl.BlockSpec((1, 1, tb), lambda i: (i, 0, 0)),
        ),
        compiler_params=pltpu.CompilerParams(
            dimension_semantics=("parallel",),
            vmem_limit_bytes=32 * 1024 * 1024,
        ),
    )(bias_total, idx_t, m_all, b1_c, w2_t, b2_c, w3_t)

    return out.reshape(b_pad)[:batch]                                # (B,)


def reference_deepfm(x_user, x_item, p):
    """Plain-JAX reference for the DeepFM forward (eval mode)."""
    hp = jax.lax.Precision.HIGHEST
    x = jnp.concatenate((x_user, x_item), axis=1)
    e = p["embed_table"][x]                                          # (B, F, D)
    lin = jnp.sum(p["linear_w"][x][..., 0], axis=1) + p["linear_b"][0]
    s = jnp.sum(e, axis=1)
    fm = 0.5 * jnp.sum(s * s - jnp.sum(e * e, axis=1), axis=1)
    flat = e.reshape(e.shape[0], -1)
    h = jax.nn.relu(jnp.dot(flat, p["mlp_w1"], precision=hp) + p["mlp_b1"])
    h = jax.nn.relu(jnp.dot(h, p["mlp_w2"], precision=hp) + p["mlp_b2"])
    deep = jnp.dot(h, p["mlp_w3"], precision=hp)[:, 0] + p["mlp_b3"][0]
    return jax.nn.sigmoid(lin + fm + deep)


if __name__ == "__main__":
    # Small, forward-implied shapes (config: embed_dim=32, hidden_dims=[64, 32]).
    B = 2048                      # four lane-dense batch tiles of tb=512
    user_num_fields = 2
    item_num_fields = 2
    F = user_num_fields + item_num_fields
    D = 32
    vocab = 100
    H1, H2 = 64, 32

    key = jax.random.PRNGKey(0)
    ks = jax.random.split(key, 10)

    x_user = jax.random.randint(ks[0], (B, user_num_fields), 0, vocab, dtype=jnp.int32)
    x_item = jax.random.randint(ks[1], (B, item_num_fields), 0, vocab, dtype=jnp.int32)

    params = dict(
        embed_table=jax.random.normal(ks[2], (vocab, D), jnp.float32) * 0.1,
        linear_w=jax.random.normal(ks[3], (vocab, 1), jnp.float32) * 0.1,
        linear_b=jax.random.normal(ks[4], (1,), jnp.float32) * 0.1,
        mlp_w1=jax.random.normal(ks[5], (F * D, H1), jnp.float32) * 0.1,
        mlp_b1=jax.random.normal(ks[6], (H1,), jnp.float32) * 0.1,
        mlp_w2=jax.random.normal(ks[7], (H1, H2), jnp.float32) * 0.1,
        mlp_b2=jax.random.normal(ks[8], (H2,), jnp.float32) * 0.1,
        mlp_w3=jax.random.normal(ks[9], (H2, 1), jnp.float32) * 0.1,
        mlp_b3=jnp.full((1,), 0.05, jnp.float32),
    )

    out = deepfm_forward(x_user, x_item, params)      # default tb=512
    out = jax.block_until_ready(out)

    ref = reference_deepfm(x_user, x_item, params)
    assert out.shape == (B,)
    assert bool(jnp.all(jnp.isfinite(out)))
    assert bool(jnp.allclose(out, ref, atol=5e-3, rtol=0.0)), (
        float(jnp.max(jnp.abs(out - ref))))

    print("KERNEL_OK")
</pallas_src>

<mosaic_0001>
module attributes {stable_mosaic.version = 11 : i64} {
  func.func @deepfm_kernel(%arg0: i32, %arg1: memref<1x1xf32, #tpu.memory_space<smem>>, %arg2: memref<4x512xi32, #tpu.memory_space<vmem>>, %arg3: memref<104x512xf32, #tpu.memory_space<vmem>>, %arg4: memref<64x1xf32, #tpu.memory_space<vmem>>, %arg5: memref<32x64xf32, #tpu.memory_space<vmem>>, %arg6: memref<32x1xf32, #tpu.memory_space<vmem>>, %arg7: memref<1x32xf32, #tpu.memory_space<vmem>>, %arg8: memref<1x1x512xf32, #tpu.memory_space<vmem>>) attributes {dimension_semantics = [#tpu.dimension_semantics<parallel>], iteration_bounds = array<i64: 4>, scalar_prefetch = 0 : i64, scratch_operands = 0 : i64, tpu.core_type = #tpu.core_type<tc>, window_params = [{transform_indices = @transform_0, window_bounds = array<i64: 1, 1>}, {transform_indices = @transform_1, window_bounds = array<i64: 4, 512>}, {pipeline_mode = #tpu.pipeline_mode<synchronous>, transform_indices = @transform_2, window_bounds = array<i64: 104, 512>}, {pipeline_mode = #tpu.pipeline_mode<synchronous>, transform_indices = @transform_3, window_bounds = array<i64: 64, 1>}, {pipeline_mode = #tpu.pipeline_mode<synchronous>, transform_indices = @transform_4, window_bounds = array<i64: 32, 64>}, {pipeline_mode = #tpu.pipeline_mode<synchronous>, transform_indices = @transform_5, window_bounds = array<i64: 32, 1>}, {pipeline_mode = #tpu.pipeline_mode<synchronous>, transform_indices = @transform_6, window_bounds = array<i64: 1, 32>}, {transform_indices = @transform_7, window_bounds = array<i64: 1, 1, 512>}]} {
    %c0 = arith.constant 0 : index
    %c0_0 = arith.constant 0 : index
    %0 = vector.load %arg2[%c0, %c0_0] : memref<4x512xi32, #tpu.memory_space<vmem>>, vector<4x512xi32>
    %1 = tpu.iota {dimensions = array<i32: 0>} : vector<128x512xi32>
    %2 = vector.extract_strided_slice %0 {offsets = [0, 0], sizes = [1, 512], strides = [1, 1]} : vector<4x512xi32> to vector<1x512xi32>
    %3 = vector.broadcast %2 : vector<1x512xi32> to vector<128x512xi32>
    %4 = arith.cmpi eq, %1, %3 : vector<128x512xi32>
    %5 = arith.extui %4 : vector<128x512xi1> to vector<128x512xi32>
    %6 = arith.sitofp %5 : vector<128x512xi32> to vector<128x512xf32>
    %7 = vector.extract_strided_slice %0 {offsets = [1, 0], sizes = [1, 512], strides = [1, 1]} : vector<4x512xi32> to vector<1x512xi32>
    %8 = vector.broadcast %7 : vector<1x512xi32> to vector<128x512xi32>
    %9 = arith.cmpi eq, %1, %8 : vector<128x512xi32>
    %10 = arith.extui %9 : vector<128x512xi1> to vector<128x512xi32>
    %11 = arith.sitofp %10 : vector<128x512xi32> to vector<128x512xf32>
    %12 = vector.extract_strided_slice %0 {offsets = [2, 0], sizes = [1, 512], strides = [1, 1]} : vector<4x512xi32> to vector<1x512xi32>
    %13 = vector.broadcast %12 : vector<1x512xi32> to vector<128x512xi32>
    %14 = arith.cmpi eq, %1, %13 : vector<128x512xi32>
    %15 = arith.extui %14 : vector<128x512xi1> to vector<128x512xi32>
    %16 = arith.sitofp %15 : vector<128x512xi32> to vector<128x512xf32>
    %17 = vector.extract_strided_slice %0 {offsets = [3, 0], sizes = [1, 512], strides = [1, 1]} : vector<4x512xi32> to vector<1x512xi32>
    %18 = vector.broadcast %17 : vector<1x512xi32> to vector<128x512xi32>
    %19 = arith.cmpi eq, %1, %18 : vector<128x512xi32>
    %20 = arith.extui %19 : vector<128x512xi1> to vector<128x512xi32>
    %21 = arith.sitofp %20 : vector<128x512xi32> to vector<128x512xf32>
    %22 = tpu.concatenate %6, %11, %16, %21 in 0 : vector<128x512xf32>, vector<128x512xf32>, vector<128x512xf32>, vector<128x512xf32> -> vector<512x512xf32>
    %c0_1 = arith.constant 0 : index
    %c0_2 = arith.constant 0 : index
    %23 = vector.load %arg3[%c0_1, %c0_2] : memref<104x512xf32, #tpu.memory_space<vmem>>, vector<104x512xf32>
    %cst = arith.constant dense<0.000000e+00> : vector<104x512xf32>
    %24 = tpu.matmul %23, %22, %cst {dimension_numbers = #tpu.dot_dimension_numbers<[1], [0], [0], [1], [0, 0, 1, 1], [], []>} : vector<104x512xf32>, vector<512x512xf32>, vector<104x512xf32> -> vector<104x512xf32>
    %25 = vector.extract_strided_slice %24 {offsets = [0, 0], sizes = [32, 512], strides = [1, 1]} : vector<104x512xf32> to vector<32x512xf32>
    %26 = vector.extract_strided_slice %24 {offsets = [32, 0], sizes = [1, 512], strides = [1, 1]} : vector<104x512xf32> to vector<1x512xf32>
    %27 = vector.extract_strided_slice %24 {offsets = [40, 0], sizes = [64, 512], strides = [1, 1]} : vector<104x512xf32> to vector<64x512xf32>
    %28 = arith.mulf %25, %25 : vector<32x512xf32>
    %cst_3 = arith.constant dense<0.000000e+00> : vector<512xf32>
    %29 = vector.multi_reduction <add>, %28, %cst_3 [0] : vector<32x512xf32> to vector<512xf32>
    %30 = vector.shape_cast %29 : vector<512xf32> to vector<1x512xf32>
    %c0_4 = arith.constant 0 : index
    %c0_5 = arith.constant 0 : index
    %31 = vector.load %arg4[%c0_4, %c0_5] : memref<64x1xf32, #tpu.memory_space<vmem>>, vector<64x1xf32>
    %32 = vector.broadcast %31 : vector<64x1xf32> to vector<64x512xf32>
    %33 = arith.addf %27, %32 : vector<64x512xf32>
    %cst_6 = arith.constant 0.000000e+00 : f32
    %34 = vector.broadcast %cst_6 : f32 to vector<64x512xf32>
    %35 = arith.maximumf %33, %34 : vector<64x512xf32>
    %c0_7 = arith.constant 0 : index
    %c0_8 = arith.constant 0 : index
    %36 = vector.load %arg5[%c0_7, %c0_8] : memref<32x64xf32, #tpu.memory_space<vmem>>, vector<32x64xf32>
    %cst_9 = arith.constant dense<0.000000e+00> : vector<32x512xf32>
    %37 = tpu.matmul %36, %35, %cst_9 {dimension_numbers = #tpu.dot_dimension_numbers<[1], [0], [0], [1], [0, 0, 1, 1], [], []>} : vector<32x64xf32>, vector<64x512xf32>, vector<32x512xf32> -> vector<32x512xf32>
    %c0_10 = arith.constant 0 : index
    %c0_11 = arith.constant 0 : index
    %38 = vector.load %arg6[%c0_10, %c0_11] : memref<32x1xf32, #tpu.memory_space<vmem>>, vector<32x1xf32>
    %39 = vector.broadcast %38 : vector<32x1xf32> to vector<32x512xf32>
    %40 = arith.addf %37, %39 : vector<32x512xf32>
    %cst_12 = arith.constant 0.000000e+00 : f32
    %41 = vector.broadcast %cst_12 : f32 to vector<32x512xf32>
    %42 = arith.maximumf %40, %41 : vector<32x512xf32>
    %c0_13 = arith.constant 0 : index
    %c0_14 = arith.constant 0 : index
    %43 = vector.load %arg7[%c0_13, %c0_14] : memref<1x32xf32, #tpu.memory_space<vmem>>, vector<1x32xf32>
    %cst_15 = arith.constant dense<0.000000e+00> : vector<1x512xf32>
    %44 = tpu.matmul %43, %42, %cst_15 {dimension_numbers = #tpu.dot_dimension_numbers<[1], [0], [0], [1], [0, 0, 1, 1], [], []>} : vector<1x32xf32>, vector<32x512xf32>, vector<1x512xf32> -> vector<1x512xf32>
    %cst_16 = arith.constant 5.000000e-01 : f32
    %45 = vector.broadcast %cst_16 : f32 to vector<1x512xf32>
    %46 = arith.mulf %45, %30 : vector<1x512xf32>
    %47 = arith.addf %26, %46 : vector<1x512xf32>
    %48 = arith.addf %47, %44 : vector<1x512xf32>
    %c0_17 = arith.constant 0 : index
    %c0_18 = arith.constant 0 : index
    %49 = memref.load %arg1[%c0_17, %c0_18] : memref<1x1xf32, #tpu.memory_space<smem>>
    %50 = vector.broadcast %49 : f32 to vector<1x512xf32>
    %51 = arith.addf %48, %50 : vector<1x512xf32>
    %52 = arith.negf %51 : vector<1x512xf32>
    %53 = math.exp %52 : vector<1x512xf32>
    %cst_19 = arith.constant 1.000000e+00 : f32
    %54 = vector.broadcast %cst_19 : f32 to vector<1x512xf32>
    %55 = arith.addf %54, %53 : vector<1x512xf32>
    %56 = arith.divf %54, %55 : vector<1x512xf32>
    %c0_20 = arith.constant 0 : index
    %c0_21 = arith.constant 0 : index
    %c0_22 = arith.constant 0 : index
    %57 = vector.load %arg8[%c0_20, %c0_21, %c0_22] : memref<1x1x512xf32, #tpu.memory_space<vmem>>, vector<1x1x512xf32>
    %58 = vector.shape_cast %57 : vector<1x1x512xf32> to vector<1x512xf32>
    %59 = vector.shape_cast %56 : vector<1x512xf32> to vector<1x1x512xf32>
    tpu.vector_store %arg8[%c0_20, %c0_21, %c0_22], %59 {strides = array<i32>} : memref<1x1x512xf32, #tpu.memory_space<vmem>>, vector<1x1x512xf32>,
    return
  }
  func.func @transform_0(%arg0: i32) -> (i32, i32) {
    %c0_i32 = arith.constant 0 : i32
    %c0_i32_0 = arith.constant 0 : i32
    %c0_i32_1 = arith.constant 0 : i32
    return %c0_i32, %c0_i32_0 : i32, i32
  }
  func.func @transform_1(%arg0: i32) -> (i32, i32) {
    %c0_i32 = arith.constant 0 : i32
    %c0_i32_0 = arith.constant 0 : i32
    return %c0_i32, %arg0 : i32, i32
  }
  func.func @transform_2(%arg0: i32) -> (i32, i32) {
    %c0_i32 = arith.constant 0 : i32
    %c0_i32_0 = arith.constant 0 : i32
    %c0_i32_1 = arith.constant 0 : i32
    return %c0_i32, %c0_i32_0 : i32, i32
  }
  func.func @transform_3(%arg0: i32) -> (i32, i32) {
    %c0_i32 = arith.constant 0 : i32
    %c0_i32_0 = arith.constant 0 : i32
    %c0_i32_1 = arith.constant 0 : i32
    return %c0_i32, %c0_i32_0 : i32, i32
  }
  func.func @transform_4(%arg0: i32) -> (i32, i32) {
    %c0_i32 = arith.constant 0 : i32
    %c0_i32_0 = arith.constant 0 : i32
    %c0_i32_1 = arith.constant 0 : i32
    return %c0_i32, %c0_i32_0 : i32, i32
  }
  func.func @transform_5(%arg0: i32) -> (i32, i32) {
    %c0_i32 = arith.constant 0 : i32
    %c0_i32_0 = arith.constant 0 : i32
    %c0_i32_1 = arith.constant 0 : i32
    return %c0_i32, %c0_i32_0 : i32, i32
  }
  func.func @transform_6(%arg0: i32) -> (i32, i32) {
    %c0_i32 = arith.constant 0 : i32
    %c0_i32_0 = arith.constant 0 : i32
    %c0_i32_1 = arith.constant 0 : i32
    return %c0_i32, %c0_i32_0 : i32, i32
  }
  func.func @transform_7(%arg0: i32) -> (i32, i32, i32) {
    %c0_i32 = arith.constant 0 : i32
    %c0_i32_0 = arith.constant 0 : i32
    %c0_i32_1 = arith.constant 0 : i32
    return %arg0, %c0_i32, %c0_i32_0 : i32, i32, i32
  }
}

</mosaic_0001>

<llo_original>
// kernel: tpu_custom_call.1
$region0: #{tpu_custom_call.1}
  #allocation0 [shape = 'u32[]', space=smem, size = 0x4, offset = 0x4, fixed_abs, tag = 'smem constant byte address 0x4 - core index']
  #allocation1 [shape = 'u32[144,128]{1,0:T(1,128)}', space=vmem, size = 0x12000, scoped, tag = 'internal scratch']
  #allocation2 [shape = 'f32[1,1]{1,0:T(1,128)S(6)}', space=smem, size = 0x200, scoped, tag = 'scoped memory for tpu_custom_call.1']
  %s0 = inlined_call_operand.<no memory space> [shape: f32[1,1], index: 0, kind: input, shape index: {}]
  %s1 = inlined_call_operand.vmem [shape: s32[4,2048], index: 1, kind: input, shape index: {}]
  %s2 = inlined_call_operand.hbm [shape: f32[104,512], index: 2, kind: input, shape index: {}]
  %s3 = inlined_call_operand.vmem [shape: f32[64,1], index: 3, kind: input, shape index: {}]
  %s4 = inlined_call_operand.vmem [shape: f32[32,64], index: 4, kind: input, shape index: {}]
  %s5 = inlined_call_operand.vmem [shape: f32[32,1], index: 5, kind: input, shape index: {}]
  %s6 = inlined_call_operand.vmem [shape: f32[1,32], index: 6, kind: input, shape index: {}]
  %s7 = inlined_call_operand.hbm [shape: f32[4,1,512], index: 7, kind: output, shape index: {}]
  %s8 = sld [smem:[#allocation0]]
  $region65: #{tpu_custom_call.1} parent=0
    _
  %s10 = ssub.s32 1, %s8
  %s11 = scalar_select 0, %s10, %s8
  %12 = sst [smem:[#allocation2]] %s0
  $region1: #{tpu_custom_call.1} parent=0
    #allocation3 [shape = 'u8[212992]{0}', space=vmem, size = 0x34000, scoped, tag = 'input window, operand 2, single buffered']
    #allocation4 [shape = 's32[2]{0}', space=sflag, size = 0x8, scoped, tag = 'scoped memory for tpu_custom_call.1']
    #allocation5 [shape = 's32[2]{0}', space=sflag, size = 0x8, scoped, tag = 'scoped memory for tpu_custom_call.1']
    #allocation6 [shape = 'u8[4096]{0}', space=vmem, size = 0x1000, scoped, tag = 'output window, operand 0']
    %13 = vsyncpa [#allocation4], 0
    %14 = vsyncpa [#allocation5], 0
    %s15 = scalar_lea.sflag [#allocation5], 1
    %16 = vsyncpa %s15, 0
    loop: start=0, step=1, limit=6
    $region2: #{tpu_custom_call.1} parent=1 // loop_pre_header
      _
    $region3: #{tpu_custom_call.1} parent=1 // loop_header
      %s18 = sphi 0, %s22
      %p19 = scmp.ge.s32.totalorder %s18, 6
      %s26 = sphi 0, %s26
      %s28 = sphi 0, %s26
      %s29 = sphi 0, %s28
      %s43 = sphi 0, %s29
      %s49 = sphi 0, %s51
      %s52 = sphi 0, %s49
      %s53 = sphi 0, %s52
      %s69 = sphi 0, %s53
      %s73 = sphi 0, %s73
      %s75 = sphi 0, %s73
      %s76 = sphi 0, %s75
      %s90 = sphi 0, %s76
      %s94 = sphi 0, %s94
      %s96 = sphi 0, %s94
      %s97 = sphi 0, %s96
      %s111 = sphi 0, %s97
      %s115 = sphi 0, %s115
      %s117 = sphi 0, %s115
      %s118 = sphi 0, %s117
      %s132 = sphi 0, %s118
      %s136 = sphi 0, %s136
      %s138 = sphi 0, %s136
      %s139 = sphi 0, %s138
      %s153 = sphi 0, %s139
      %s157 = sphi 0, %s157
      %s159 = sphi 0, %s157
      %s160 = sphi 0, %s159
      %s174 = sphi 0, %s160
      %s180 = sphi 0, %s182
      %s183 = sphi 0, %s180
      %s184 = sphi 0, %s183
      %s200 = sphi 0, %s184
    $region4: #{tpu_custom_call.1} parent=1 // loop_header_branch
      %21 = sbr.rel (%p19) target = $region8
    $region5: #{tpu_custom_call.1} parent=1 // loop_body
      %s23 = ssub.s32 %s18, 1
      %s24 = ssub.s32 %s18, 2
      %s25 = sadd.s32 %s18, 1
      %s27 = sadd.s32 %s26, 1
      %p30 = scmp.eq.s32.totalorder %s18, 3
      %p31 = scmp.ne.s32.totalorder %s26, %s28
      %p32 = scmp.eq.s32.totalorder %s18, 0
      %p33 = por %p31, %p32
      %p34 = scmp.ne.s32.totalorder %s26, %s28
      %p35 = scmp.eq.s32.totalorder %s23, 3
      %p36 = por %p34, %p35
      %p37 = scmp.ne.s32.totalorder %s28, %s29
      %p38 = scmp.eq.s32.totalorder %s23, 0
      %p39 = por %p37, %p38
      %p40 = scmp.ne.s32.totalorder %s28, %s29
      %p41 = scmp.eq.s32.totalorder %s24, 3
      %p42 = por %p40, %p41
      %p44 = scmp.ne.s32.totalorder %s29, %s43
      %p45 = scmp.eq.s32.totalorder %s24, 0
      %p46 = por %p44, %p45
      %s47 = ssub.s32 %s18, %s25
      %p48 = scmp.eq.s32.totalorder %s47, 0
      %s50 = sadd.s32 %s49, 1
      %s51 = scalar_select %p48, %s49, %s50
      %p54 = pneg %p48
      %p55 = scmp.eq.s32.totalorder %s18, 3
      %p56 = por %p54, %p55
      %p57 = scmp.ne.s32.totalorder %s49, %s52
      %p58 = scmp.eq.s32.totalorder %s18, 0
      %p59 = por %p57, %p58
      %p60 = scmp.ne.s32.totalorder %s49, %s52
      %p61 = scmp.eq.s32.totalorder %s23, 3
      %p62 = por %p60, %p61
      %p63 = scmp.ne.s32.totalorder %s52, %s53
      %p64 = scmp.eq.s32.totalorder %s23, 0
      %p65 = por %p63, %p64
      %p66 = scmp.ne.s32.totalorder %s52, %s53
      %p67 = scmp.eq.s32.totalorder %s24, 3
      %p68 = por %p66, %p67
      %p70 = scmp.ne.s32.totalorder %s53, %s69
      %p71 = scmp.eq.s32.totalorder %s24, 0
      %p72 = por %p70, %p71
      %s74 = sadd.s32 %s73, 1
      %p77 = scmp.eq.s32.totalorder %s18, 3
      %p78 = scmp.ne.s32.totalorder %s73, %s75
      %p79 = scmp.eq.s32.totalorder %s18, 0
      %p80 = por %p78, %p79
      %p81 = scmp.ne.s32.totalorder %s73, %s75
      %p82 = scmp.eq.s32.totalorder %s23, 3
      %p83 = por %p81, %p82
      %p84 = scmp.ne.s32.totalorder %s75, %s76
      %p85 = scmp.eq.s32.totalorder %s23, 0
      %p86 = por %p84, %p85
      %p87 = scmp.ne.s32.totalorder %s75, %s76
      %p88 = scmp.eq.s32.totalorder %s24, 3
      %p89 = por %p87, %p88
      %p91 = scmp.ne.s32.totalorder %s76, %s90
      %p92 = scmp.eq.s32.totalorder %s24, 0
      %p93 = por %p91, %p92
      %s95 = sadd.s32 %s94, 1
      %p98 = scmp.eq.s32.totalorder %s18, 3
      %p99 = scmp.ne.s32.totalorder %s94, %s96
      %p100 = scmp.eq.s32.totalorder %s18, 0
      %p101 = por %p99, %p100
      %p102 = scmp.ne.s32.totalorder %s94, %s96
      %p103 = scmp.eq.s32.totalorder %s23, 3
      %p104 = por %p102, %p103
      %p105 = scmp.ne.s32.totalorder %s96, %s97
      %p106 = scmp.eq.s32.totalorder %s23, 0
      %p107 = por %p105, %p106
      %p108 = scmp.ne.s32.totalorder %s96, %s97
      %p109 = scmp.eq.s32.totalorder %s24, 3
      %p110 = por %p108, %p109
      %p112 = scmp.ne.s32.totalorder %s97, %s111
      %p113 = scmp.eq.s32.totalorder %s24, 0
      %p114 = por %p112, %p113
      %s116 = sadd.s32 %s115, 1
      %p119 = scmp.eq.s32.totalorder %s18, 3
      %p120 = scmp.ne.s32.totalorder %s115, %s117
      %p121 = scmp.eq.s32.totalorder %s18, 0
      %p122 = por %p120, %p121
      %p123 = scmp.ne.s32.totalorder %s115, %s117
      %p124 = scmp.eq.s32.totalorder %s23, 3
      %p125 = por %p123, %p124
      %p126 = scmp.ne.s32.totalorder %s117, %s118
      %p127 = scmp.eq.s32.totalorder %s23, 0
      %p128 = por %p126, %p127
      %p129 = scmp.ne.s32.totalorder %s117, %s118
      %p130 = scmp.eq.s32.totalorder %s24, 3
      %p131 = por %p129, %p130
      %p133 = scmp.ne.s32.totalorder %s118, %s132
      %p134 = scmp.eq.s32.totalorder %s24, 0
      %p135 = por %p133, %p134
      %s137 = sadd.s32 %s136, 1
      %p140 = scmp.eq.s32.totalorder %s18, 3
      %p141 = scmp.ne.s32.totalorder %s136, %s138
      %p142 = scmp.eq.s32.totalorder %s18, 0
      %p143 = por %p141, %p142
      %p144 = scmp.ne.s32.totalorder %s136, %s138
      %p145 = scmp.eq.s32.totalorder %s23, 3
      %p146 = por %p144, %p145
      %p147 = scmp.ne.s32.totalorder %s138, %s139
      %p148 = scmp.eq.s32.totalorder %s23, 0
      %p149 = por %p147, %p148
      %p150 = scmp.ne.s32.totalorder %s138, %s139
      %p151 = scmp.eq.s32.totalorder %s24, 3
      %p152 = por %p150, %p151
      %p154 = scmp.ne.s32.totalorder %s139, %s153
      %p155 = scmp.eq.s32.totalorder %s24, 0
      %p156 = por %p154, %p155
      %s158 = sadd.s32 %s157, 1
      %p161 = scmp.eq.s32.totalorder %s18, 3
      %p162 = scmp.ne.s32.totalorder %s157, %s159
      %p163 = scmp.eq.s32.totalorder %s18, 0
      %p164 = por %p162, %p163
      %p165 = scmp.ne.s32.totalorder %s157, %s159
      %p166 = scmp.eq.s32.totalorder %s23, 3
      %p167 = por %p165, %p166
      %p168 = scmp.ne.s32.totalorder %s159, %s160
      %p169 = scmp.eq.s32.totalorder %s23, 0
      %p170 = por %p168, %p169
      %p171 = scmp.ne.s32.totalorder %s159, %s160
      %p172 = scmp.eq.s32.totalorder %s24, 3
      %p173 = por %p171, %p172
      %p175 = scmp.ne.s32.totalorder %s160, %s174
      %p176 = scmp.eq.s32.totalorder %s24, 0
      %p177 = por %p175, %p176
      %s178 = ssub.s32 %s18, %s25
      %p179 = scmp.eq.s32.totalorder %s178, 0
      %s181 = sadd.s32 %s180, 1
      %s182 = scalar_select %p179, %s180, %s181
      %p185 = pneg %p179
      %p186 = scmp.eq.s32.totalorder %s18, 3
      %p187 = por %p185, %p186
      %p188 = scmp.ne.s32.totalorder %s180, %s183
      %p189 = scmp.eq.s32.totalorder %s18, 0
      %p190 = por %p188, %p189
      %p191 = scmp.ne.s32.totalorder %s180, %s183
      %p192 = scmp.eq.s32.totalorder %s23, 3
      %p193 = por %p191, %p192
      %p194 = scmp.ne.s32.totalorder %s183, %s184
      %p195 = scmp.eq.s32.totalorder %s23, 0
      %p196 = por %p194, %p195
      %p197 = scmp.ne.s32.totalorder %s183, %s184
      %p198 = scmp.eq.s32.totalorder %s24, 3
      %p199 = por %p197, %p198
      %p201 = scmp.ne.s32.totalorder %s184, %s200
      %p202 = scmp.eq.s32.totalorder %s24, 0
      %p203 = por %p201, %p202
      %p204 = scmp.le.s32.totalorder 1, %s18
      %p205 = scmp.lt.s32.totalorder %s18, 5
      %p206 = pnand %p204, %p205
      %p207 = pneg %p206
      // Predicated region
      $region9: #{tpu_custom_call.1} parent=5 // pred_check
        _
      $region10: #{tpu_custom_call.1} parent=5 // pred_check_branch
        %209 = sbr.rel (%p206) target = $region12
      $region11: #{tpu_custom_call.1} parent=5 // pred_region
        %s210 = ssub.s32 %s18, 1
        // Predicated region
        $region13: #{tpu_custom_call.1} parent=11 // pred_check
          %p211 = pneg %p39
        $region14: #{tpu_custom_call.1} parent=11 // pred_check_branch
          %213 = sbr.rel (%p211) target = $region16
        $region15: #{tpu_custom_call.1} parent=11 // pred_region
          _
        $region16: #{tpu_custom_call.1} parent=11 // pred_fallthru
          _
        // Predicated region
        $region17: #{tpu_custom_call.1} parent=11 // pred_check
          %p214 = pneg %p86
        $region18: #{tpu_custom_call.1} parent=11 // pred_check_branch
          %216 = sbr.rel (%p214) target = $region20
        $region19: #{tpu_custom_call.1} parent=11 // pred_region
          %s218 = ssub.s32 6656, 6656
          %219 = vsyncadd [#allocation4], %s218
          %s220 = sshll.u32 [#allocation3], 4
          %s221 = int_to_ptr.vmem [resolvable:$true] %s220
          %226 = dma.hbm_to_vmem [thread:$0]  %s2, 6656, %s221, [#allocation4], 512, 512, 32
        $region20: #{tpu_custom_call.1} parent=11 // pred_fallthru
          _
        // Predicated region
        $region21: #{tpu_custom_call.1} parent=11 // pred_check
          %p227 = pneg %p107
        $region22: #{tpu_custom_call.1} parent=11 // pred_check_branch
          %229 = sbr.rel (%p227) target = $region24
        $region23: #{tpu_custom_call.1} parent=11 // pred_region
          _
        $region24: #{tpu_custom_call.1} parent=11 // pred_fallthru
          _
        // Predicated region
        $region25: #{tpu_custom_call.1} parent=11 // pred_check
          %p230 = pneg %p128
        $region26: #{tpu_custom_call.1} parent=11 // pred_check_branch
          %232 = sbr.rel (%p230) target = $region28
        $region27: #{tpu_custom_call.1} parent=11 // pred_region
          _
        $region28: #{tpu_custom_call.1} parent=11 // pred_fallthru
          _
        // Predicated region
        $region29: #{tpu_custom_call.1} parent=11 // pred_check
          %p233 = pneg %p149
        $region30: #{tpu_custom_call.1} parent=11 // pred_check_branch
          %235 = sbr.rel (%p233) target = $region32
        $region31: #{tpu_custom_call.1} parent=11 // pred_region
          _
        $region32: #{tpu_custom_call.1} parent=11 // pred_fallthru
          _
        // Predicated region
        $region33: #{tpu_custom_call.1} parent=11 // pred_check
          %p236 = pneg %p170
        $region34: #{tpu_custom_call.1} parent=11 // pred_check_branch
          %238 = sbr.rel (%p236) target = $region36
        $region35: #{tpu_custom_call.1} parent=11 // pred_region
          _
        $region36: #{tpu_custom_call.1} parent=11 // pred_fallthru
          _
      $region12: #{tpu_custom_call.1} parent=5 // pred_fallthru
        _
      %p239 = scmp.lt.s32.totalorder %s18, 4
      // Predicated region
      $region37: #{tpu_custom_call.1} parent=5 // pred_check
        %p240 = pneg %p239
      $region38: #{tpu_custom_call.1} parent=5 // pred_check_branch
        %242 = sbr.rel (%p240) target = $region40
      $region39: #{tpu_custom_call.1} parent=5 // pred_region
        // Predicated region
        $region41: #{tpu_custom_call.1} parent=39 // pred_check
          %p243 = pneg %p59
        $region42: #{tpu_custom_call.1} parent=39 // pred_check_branch
          %245 = sbr.rel (%p243) target = $region44
        $region43: #{tpu_custom_call.1} parent=39 // pred_region
          %s246 = smul.u32 4, %s18
          %p247 = scmp.lt.s32.totalorder %s246, 15
          %s248 = scalar_select %p247, %s246, 15
          %s249 = smul.addr %s248, 4
          %s250 = scalar_lea.vmem %s1, %s249
          %s251 = smul.u32 4, %s18
        $region44: #{tpu_custom_call.1} parent=39 // pred_fallthru
          _
      $region40: #{tpu_custom_call.1} parent=5 // pred_fallthru
        _
      %p252 = scmp.le.s32.totalorder 1, %s18
      %p253 = scmp.lt.s32.totalorder %s18, 5
      %p254 = pnand %p252, %p253
      %p255 = pneg %p254
      // Predicated region
      $region45: #{tpu_custom_call.1} parent=5 // pred_check
        _
      $region46: #{tpu_custom_call.1} parent=5 // pred_check_branch
        %257 = sbr.rel (%p254) target = $region48
      $region47: #{tpu_custom_call.1} parent=5 // pred_region
        %s258 = ssub.s32 %s18, 1
        // Predicated region
        $region49: #{tpu_custom_call.1} parent=47 // pred_check
          %p259 = pneg %p86
        $region50: #{tpu_custom_call.1} parent=47 // pred_check_branch
          %261 = sbr.rel (%p259) target = $region52
        $region51: #{tpu_custom_call.1} parent=47 // pred_region
          %262 = dma.done [#allocation4], 6656
        $region52: #{tpu_custom_call.1} parent=47 // pred_fallthru
          _
        %p263 = pneg %p39
        %p264 = pneg %p36
        %s265 = smul.u32 4, %s23
        %p266 = scmp.lt.s32.totalorder %s265, 15
        %s267 = scalar_select %p266, %s265, 15
        %s268 = smul.addr %s267, 4
        %s269 = scalar_lea.vmem %s1, %s268
        %p270 = pneg %p65
        %p271 = pneg %p62
        %p272 = pneg %p86
        %p273 = pneg %p83
        %p274 = pneg %p107
        %p275 = pneg %p104
        %p276 = pneg %p128
        %p277 = pneg %p125
        %p278 = pneg %p149
        %p279 = pneg %p146
        %p280 = pneg %p170
        %p281 = pneg %p167
        %p282 = pneg %p196
        %p283 = pneg %p193
        %s284 = sand.u32 %s183, 1
        %s285 = scalar_lea.sflag [#allocation5], %s284
        %s286 = sand.u32 %s183, 1
        %s287 = smul.addr %s286, 4
        %s288 = scalar_lea.vmem [#allocation6], %s287
        %s289 = smul.u32 4, %s23
        %p290 = scmp.lt.s32.totalorder %s289, 15
        %s291 = scalar_select %p290, %s289, 15
        %s292 = smul.addr %s291, 4
        %s293 = scalar_lea.vmem %s1, %s292
        %s294 = smul.u32 4, %s23
        %v295 = vld [vmem:[%s293] sm:$0xff]
        %v296 = vld [vmem:[%s293 + $0x8] sm:$0xff]
        %v297 = vlaneseq
        %v298 = vshrl.u32 %v297, 7
        %v299 = vadd.s32 %v298, 8
        %v300 = vadd.s32 %v298, 16
        %v301 = vadd.s32 %v298, 24
        %v302 = vadd.s32 %v298, 32
        %v303 = vadd.s32 %v298, 40
        %v304 = vadd.s32 %v298, 48
        %v305 = vadd.s32 %v298, 56
        %v306 = vadd.s32 %v298, 64
        %v307 = vadd.s32 %v298, 72
        %v308 = vadd.s32 %v298, 80
        %v309 = vadd.s32 %v298, 88
        %v310 = vadd.s32 %v298, 96
        %v311 = vadd.s32 %v298, 104
        %v312 = vadd.s32 %v298, 112
        %v313 = vadd.s32 %v298, 120
        %v314 = vlaneseq
        %v315 = vshrl.u32 %v314, 7
        %v316 = vsub.s32 0, %v315
        %v317 = vrot.slane %v295, %v316
        %v318 = vlaneseq
        %v319 = vshrl.u32 %v318, 7
        %v320 = vsub.s32 4, %v319
        %v321 = vrot.slane %v295, %v320
        %v322 = vlaneseq
        %v323 = vshrl.u32 %v322, 7
        %v324 = vsub.s32 0, %v323
        %v325 = vrot.slane %v296, %v324
        %v326 = vlaneseq
        %v327 = vshrl.u32 %v326, 7
        %v328 = vsub.s32 4, %v327
        %v329 = vrot.slane %v296, %v328
        %v330 = vlaneseq
        %v331 = vshrl.u32 %v330, 7
        %v332 = vsub.s32 0, %v331
        %v333 = vrot.slane %v317, %v332
        %v334 = vlaneseq
        %v335 = vshrl.u32 %v334, 7
        %v336 = vsub.s32 0, %v335
        %v337 = vrot.slane %v321, %v336
        %v338 = vlaneseq
        %v339 = vshrl.u32 %v338, 7
        %v340 = vsub.s32 0, %v339
        %v341 = vrot.slane %v325, %v340
        %v342 = vlaneseq
        %v343 = vshrl.u32 %v342, 7
        %v344 = vsub.s32 0, %v343
        %v345 = vrot.slane %v329, %v344
        %vm346 = vcmp.eq.s32.totalorder %v298, %v333
        %vm347 = vcmp.eq.s32.totalorder %v298, %v337
        %vm348 = vcmp.eq.s32.totalorder %v298, %v341
        %vm349 = vcmp.eq.s32.totalorder %v298, %v345
        %vm350 = vcmp.eq.s32.totalorder %v299, %v333
        %vm351 = vcmp.eq.s32.totalorder %v299, %v337
        %vm352 = vcmp.eq.s32.totalorder %v299, %v341
        %vm353 = vcmp.eq.s32.totalorder %v299, %v345
        %vm354 = vcmp.eq.s32.totalorder %v300, %v333
        %vm355 = vcmp.eq.s32.totalorder %v300, %v337
        %vm356 = vcmp.eq.s32.totalorder %v300, %v341
        %vm357 = vcmp.eq.s32.totalorder %v300, %v345
        %vm358 = vcmp.eq.s32.totalorder %v301, %v333
        %vm359 = vcmp.eq.s32.totalorder %v301, %v337
        %vm360 = vcmp.eq.s32.totalorder %v301, %v341
        %vm361 = vcmp.eq.s32.totalorder %v301, %v345
        %vm362 = vcmp.eq.s32.totalorder %v302, %v333
        %vm363 = vcmp.eq.s32.totalorder %v302, %v337
        %vm364 = vcmp.eq.s32.totalorder %v302, %v341
        %vm365 = vcmp.eq.s32.totalorder %v302, %v345
        %vm366 = vcmp.eq.s32.totalorder %v303, %v333
        %vm367 = vcmp.eq.s32.totalorder %v303, %v337
        %vm368 = vcmp.eq.s32.totalorder %v303, %v341
        %vm369 = vcmp.eq.s32.totalorder %v303, %v345
        %vm370 = vcmp.eq.s32.totalorder %v304, %v333
        %vm371 = vcmp.eq.s32.totalorder %v304, %v337
        %vm372 = vcmp.eq.s32.totalorder %v304, %v341
        %vm373 = vcmp.eq.s32.totalorder %v304, %v345
        %vm374 = vcmp.eq.s32.totalorder %v305, %v333
        %vm375 = vcmp.eq.s32.totalorder %v305, %v337
        %vm376 = vcmp.eq.s32.totalorder %v305, %v341
        %vm377 = vcmp.eq.s32.totalorder %v305, %v345
        %vm378 = vcmp.eq.s32.totalorder %v306, %v333
        %vm379 = vcmp.eq.s32.totalorder %v306, %v337
        %vm380 = vcmp.eq.s32.totalorder %v306, %v341
        %vm381 = vcmp.eq.s32.totalorder %v306, %v345
        %vm382 = vcmp.eq.s32.totalorder %v307, %v333
        %vm383 = vcmp.eq.s32.totalorder %v307, %v337
        %vm384 = vcmp.eq.s32.totalorder %v307, %v341
        %vm385 = vcmp.eq.s32.totalorder %v307, %v345
        %vm386 = vcmp.eq.s32.totalorder %v308, %v333
        %vm387 = vcmp.eq.s32.totalorder %v308, %v337
        %vm388 = vcmp.eq.s32.totalorder %v308, %v341
        %vm389 = vcmp.eq.s32.totalorder %v308, %v345
        %vm390 = vcmp.eq.s32.totalorder %v309, %v333
        %vm391 = vcmp.eq.s32.totalorder %v309, %v337
        %vm392 = vcmp.eq.s32.totalorder %v309, %v341
        %vm393 = vcmp.eq.s32.totalorder %v309, %v345
        %vm394 = vcmp.eq.s32.totalorder %v310, %v333
        %vm395 = vcmp.eq.s32.totalorder %v310, %v337
        %vm396 = vcmp.eq.s32.totalorder %v310, %v341
        %vm397 = vcmp.eq.s32.totalorder %v310, %v345
        %vm398 = vcmp.eq.s32.totalorder %v311, %v333
        %vm399 = vcmp.eq.s32.totalorder %v311, %v337
        %vm400 = vcmp.eq.s32.totalorder %v311, %v341
        %vm401 = vcmp.eq.s32.totalorder %v311, %v345
        %vm402 = vcmp.eq.s32.totalorder %v312, %v333
        %vm403 = vcmp.eq.s32.totalorder %v312, %v337
        %vm404 = vcmp.eq.s32.totalorder %v312, %v341
        %vm405 = vcmp.eq.s32.totalorder %v312, %v345
        %vm406 = vcmp.eq.s32.totalorder %v313, %v333
        %vm407 = vcmp.eq.s32.totalorder %v313, %v337
        %vm408 = vcmp.eq.s32.totalorder %v313, %v341
        %vm409 = vcmp.eq.s32.totalorder %v313, %v345
        %v410 = vsel %vm346, 1, 0
        %v411 = vsel %vm347, 1, 0
        %v412 = vsel %vm348, 1, 0
        %v413 = vsel %vm349, 1, 0
        %v414 = vsel %vm350, 1, 0
        %v415 = vsel %vm351, 1, 0
        %v416 = vsel %vm352, 1, 0
        %v417 = vsel %vm353, 1, 0
        %v418 = vsel %vm354, 1, 0
        %v419 = vsel %vm355, 1, 0
        %v420 = vsel %vm356, 1, 0
        %v421 = vsel %vm357, 1, 0
        %v422 = vsel %vm358, 1, 0
        %v423 = vsel %vm359, 1, 0
        %v424 = vsel %vm360, 1, 0
        %v425 = vsel %vm361, 1, 0
        %v426 = vsel %vm362, 1, 0
        %v427 = vsel %vm363, 1, 0
        %v428 = vsel %vm364, 1, 0
        %v429 = vsel %vm365, 1, 0
        %v430 = vsel %vm366, 1, 0
        %v431 = vsel %vm367, 1, 0
        %v432 = vsel %vm368, 1, 0
        %v433 = vsel %vm369, 1, 0
        %v434 = vsel %vm370, 1, 0
        %v435 = vsel %vm371, 1, 0
        %v436 = vsel %vm372, 1, 0
        %v437 = vsel %vm373, 1, 0
        %v438 = vsel %vm374, 1, 0
        %v439 = vsel %vm375, 1, 0
        %v440 = vsel %vm376, 1, 0
        %v441 = vsel %vm377, 1, 0
        %v442 = vsel %vm378, 1, 0
        %v443 = vsel %vm379, 1, 0
        %v444 = vsel %vm380, 1, 0
        %v445 = vsel %vm381, 1, 0
        %v446 = vsel %vm382, 1, 0
        %v447 = vsel %vm383, 1, 0
        %v448 = vsel %vm384, 1, 0
        %v449 = vsel %vm385, 1, 0
        %v450 = vsel %vm386, 1, 0
        %v451 = vsel %vm387, 1, 0
        %v452 = vsel %vm388, 1, 0
        %v453 = vsel %vm389, 1, 0
        %v454 = vsel %vm390, 1, 0
        %v455 = vsel %vm391, 1, 0
        %v456 = vsel %vm392, 1, 0
        %v457 = vsel %vm393, 1, 0
        %v458 = vsel %vm394, 1, 0
        %v459 = vsel %vm395, 1, 0
        %v460 = vsel %vm396, 1, 0
        %v461 = vsel %vm397, 1, 0
        %v462 = vsel %vm398, 1, 0
        %v463 = vsel %vm399, 1, 0
        %v464 = vsel %vm400, 1, 0
        %v465 = vsel %vm401, 1, 0
        %v466 = vsel %vm402, 1, 0
        %v467 = vsel %vm403, 1, 0
        %v468 = vsel %vm404, 1, 0
        %v469 = vsel %vm405, 1, 0
        %v470 = vsel %vm406, 1, 0
        %v471 = vsel %vm407, 1, 0
        %v472 = vsel %vm408, 1, 0
        %v473 = vsel %vm409, 1, 0
        %v474 = vcvt.s32.f32 %v410
        %v475 = vcvt.s32.f32 %v411
        %v476 = vcvt.s32.f32 %v412
        %v477 = vcvt.s32.f32 %v413
        %v478 = vcvt.s32.f32 %v414
        %v479 = vcvt.s32.f32 %v415
        %v480 = vcvt.s32.f32 %v416
        %v481 = vcvt.s32.f32 %v417
        %v482 = vcvt.s32.f32 %v418
        %v483 = vcvt.s32.f32 %v419
        %v484 = vcvt.s32.f32 %v420
        %v485 = vcvt.s32.f32 %v421
        %v486 = vcvt.s32.f32 %v422
        %v487 = vcvt.s32.f32 %v423
        %v488 = vcvt.s32.f32 %v424
        %v489 = vcvt.s32.f32 %v425
        %v490 = vcvt.s32.f32 %v426
        %v491 = vcvt.s32.f32 %v427
        %v492 = vcvt.s32.f32 %v428
        %v493 = vcvt.s32.f32 %v429
        %v494 = vcvt.s32.f32 %v430
        %v495 = vcvt.s32.f32 %v431
        %v496 = vcvt.s32.f32 %v432
        %v497 = vcvt.s32.f32 %v433
        %v498 = vcvt.s32.f32 %v434
        %v499 = vcvt.s32.f32 %v435
        %v500 = vcvt.s32.f32 %v436
        %v501 = vcvt.s32.f32 %v437
        %v502 = vcvt.s32.f32 %v438
        %v503 = vcvt.s32.f32 %v439
        %v504 = vcvt.s32.f32 %v440
        %v505 = vcvt.s32.f32 %v441
        %v506 = vcvt.s32.f32 %v442
        %v507 = vcvt.s32.f32 %v443
        %v508 = vcvt.s32.f32 %v444
        %v509 = vcvt.s32.f32 %v445
        %v510 = vcvt.s32.f32 %v446
        %v511 = vcvt.s32.f32 %v447
        %v512 = vcvt.s32.f32 %v448
        %v513 = vcvt.s32.f32 %v449
        %v514 = vcvt.s32.f32 %v450
        %v515 = vcvt.s32.f32 %v451
        %v516 = vcvt.s32.f32 %v452
        %v517 = vcvt.s32.f32 %v453
        %v518 = vcvt.s32.f32 %v454
        %v519 = vcvt.s32.f32 %v455
        %v520 = vcvt.s32.f32 %v456
        %v521 = vcvt.s32.f32 %v457
        %v522 = vcvt.s32.f32 %v458
        %v523 = vcvt.s32.f32 %v459
        %v524 = vcvt.s32.f32 %v460
        %v525 = vcvt.s32.f32 %v461
        %v526 = vcvt.s32.f32 %v462
        %v527 = vcvt.s32.f32 %v463
        %v528 = vcvt.s32.f32 %v464
        %v529 = vcvt.s32.f32 %v465
        %v530 = vcvt.s32.f32 %v466
        %v531 = vcvt.s32.f32 %v467
        %v532 = vcvt.s32.f32 %v468
        %v533 = vcvt.s32.f32 %v469
        %v534 = vcvt.s32.f32 %v470
        %v535 = vcvt.s32.f32 %v471
        %v536 = vcvt.s32.f32 %v472
        %v537 = vcvt.s32.f32 %v473
        %v538 = vlaneseq
        %v539 = vshrl.u32 %v538, 7
        %v540 = vsub.s32 1, %v539
        %v541 = vrot.slane %v295, %v540
        %v542 = vlaneseq
        %v543 = vshrl.u32 %v542, 7
        %v544 = vsub.s32 5, %v543
        %v545 = vrot.slane %v295, %v544
        %v546 = vlaneseq
        %v547 = vshrl.u32 %v546, 7
        %v548 = vsub.s32 1, %v547
        %v549 = vrot.slane %v296, %v548
        %v550 = vlaneseq
        %v551 = vshrl.u32 %v550, 7
        %v552 = vsub.s32 5, %v551
        %v553 = vrot.slane %v296, %v552
        %v554 = vlaneseq
        %v555 = vshrl.u32 %v554, 7
        %v556 = vsub.s32 1, %v555
        %v557 = vrot.slane %v541, %v556
        %v558 = vlaneseq
        %v559 = vshrl.u32 %v558, 7
        %v560 = vsub.s32 1, %v559
        %v561 = vrot.slane %v545, %v560
        %v562 = vlaneseq
        %v563 = vshrl.u32 %v562, 7
        %v564 = vsub.s32 1, %v563
        %v565 = vrot.slane %v549, %v564
        %v566 = vlaneseq
        %v567 = vshrl.u32 %v566, 7
        %v568 = vsub.s32 1, %v567
        %v569 = vrot.slane %v553, %v568
        %vm570 = vcmp.eq.s32.totalorder %v298, %v557
        %vm571 = vcmp.eq.s32.totalorder %v298, %v561
        %vm572 = vcmp.eq.s32.totalorder %v298, %v565
        %vm573 = vcmp.eq.s32.totalorder %v298, %v569
        %vm574 = vcmp.eq.s32.totalorder %v299, %v557
        %vm575 = vcmp.eq.s32.totalorder %v299, %v561
        %vm576 = vcmp.eq.s32.totalorder %v299, %v565
        %vm577 = vcmp.eq.s32.totalorder %v299, %v569
        %vm578 = vcmp.eq.s32.totalorder %v300, %v557
        %vm579 = vcmp.eq.s32.totalorder %v300, %v561
        %vm580 = vcmp.eq.s32.totalorder %v300, %v565
        %vm581 = vcmp.eq.s32.totalorder %v300, %v569
        %vm582 = vcmp.eq.s32.totalorder %v301, %v557
        %vm583 = vcmp.eq.s32.totalorder %v301, %v561
        %vm584 = vcmp.eq.s32.totalorder %v301, %v565
        %vm585 = vcmp.eq.s32.totalorder %v301, %v569
        %vm586 = vcmp.eq.s32.totalorder %v302, %v557
        %vm587 = vcmp.eq.s32.totalorder %v302, %v561
        %vm588 = vcmp.eq.s32.totalorder %v302, %v565
        %vm589 = vcmp.eq.s32.totalorder %v302, %v569
        %vm590 = vcmp.eq.s32.totalorder %v303, %v557
        %vm591 = vcmp.eq.s32.totalorder %v303, %v561
        %vm592 = vcmp.eq.s32.totalorder %v303, %v565
        %vm593 = vcmp.eq.s32.totalorder %v303, %v569
        %vm594 = vcmp.eq.s32.totalorder %v304, %v557
        %vm595 = vcmp.eq.s32.totalorder %v304, %v561
        %vm596 = vcmp.eq.s32.totalorder %v304, %v565
        %vm597 = vcmp.eq.s32.totalorder %v304, %v569
        %vm598 = vcmp.eq.s32.totalorder %v305, %v557
        %vm599 = vcmp.eq.s32.totalorder %v305, %v561
        %vm600 = vcmp.eq.s32.totalorder %v305, %v565
        %vm601 = vcmp.eq.s32.totalorder %v305, %v569
        %vm602 = vcmp.eq.s32.totalorder %v306, %v557
        %vm603 = vcmp.eq.s32.totalorder %v306, %v561
        %vm604 = vcmp.eq.s32.totalorder %v306, %v565
        %vm605 = vcmp.eq.s32.totalorder %v306, %v569
        %vm606 = vcmp.eq.s32.totalorder %v307, %v557
        %vm607 = vcmp.eq.s32.totalorder %v307, %v561
        %vm608 = vcmp.eq.s32.totalorder %v307, %v565
        %vm609 = vcmp.eq.s32.totalorder %v307, %v569
        %vm610 = vcmp.eq.s32.totalorder %v308, %v557
        %vm611 = vcmp.eq.s32.totalorder %v308, %v561
        %vm612 = vcmp.eq.s32.totalorder %v308, %v565
        %vm613 = vcmp.eq.s32.totalorder %v308, %v569
        %vm614 = vcmp.eq.s32.totalorder %v309, %v557
        %vm615 = vcmp.eq.s32.totalorder %v309, %v561
        %vm616 = vcmp.eq.s32.totalorder %v309, %v565
        %vm617 = vcmp.eq.s32.totalorder %v309, %v569
        %vm618 = vcmp.eq.s32.totalorder %v310, %v557
        %vm619 = vcmp.eq.s32.totalorder %v310, %v561
        %vm620 = vcmp.eq.s32.totalorder %v310, %v565
        %vm621 = vcmp.eq.s32.totalorder %v310, %v569
        %vm622 = vcmp.eq.s32.totalorder %v311, %v557
        %vm623 = vcmp.eq.s32.totalorder %v311, %v561
        %vm624 = vcmp.eq.s32.totalorder %v311, %v565
        %vm625 = vcmp.eq.s32.totalorder %v311, %v569
        %vm626 = vcmp.eq.s32.totalorder %v312, %v557
        %vm627 = vcmp.eq.s32.totalorder %v312, %v561
        %vm628 = vcmp.eq.s32.totalorder %v312, %v565
        %vm629 = vcmp.eq.s32.totalorder %v312, %v569
        %vm630 = vcmp.eq.s32.totalorder %v313, %v557
        %vm631 = vcmp.eq.s32.totalorder %v313, %v561
        %vm632 = vcmp.eq.s32.totalorder %v313, %v565
        %vm633 = vcmp.eq.s32.totalorder %v313, %v569
        %v634 = vsel %vm570, 1, 0
        %v635 = vsel %vm571, 1, 0
        %v636 = vsel %vm572, 1, 0
        %v637 = vsel %vm573, 1, 0
        %v638 = vsel %vm574, 1, 0
        %v639 = vsel %vm575, 1, 0
        %v640 = vsel %vm576, 1, 0
        %v641 = vsel %vm577, 1, 0
        %v642 = vsel %vm578, 1, 0
        %v643 = vsel %vm579, 1, 0
        %v644 = vsel %vm580, 1, 0
        %v645 = vsel %vm581, 1, 0
        %v646 = vsel %vm582, 1, 0
        %v647 = vsel %vm583, 1, 0
        %v648 = vsel %vm584, 1, 0
        %v649 = vsel %vm585, 1, 0
        %v650 = vsel %vm586, 1, 0
        %v651 = vsel %vm587, 1, 0
        %v652 = vsel %vm588, 1, 0
        %v653 = vsel %vm589, 1, 0
        %v654 = vsel %vm590, 1, 0
        %v655 = vsel %vm591, 1, 0
        %v656 = vsel %vm592, 1, 0
        %v657 = vsel %vm593, 1, 0
        %v658 = vsel %vm594, 1, 0
        %v659 = vsel %vm595, 1, 0
        %v660 = vsel %vm596, 1, 0
        %v661 = vsel %vm597, 1, 0
        %v662 = vsel %vm598, 1, 0
        %v663 = vsel %vm599, 1, 0
        %v664 = vsel %vm600, 1, 0
        %v665 = vsel %vm601, 1, 0
        %v666 = vsel %vm602, 1, 0
        %v667 = vsel %vm603, 1, 0
        %v668 = vsel %vm604, 1, 0
        %v669 = vsel %vm605, 1, 0
        %v670 = vsel %vm606, 1, 0
        %v671 = vsel %vm607, 1, 0
        %v672 = vsel %vm608, 1, 0
        %v673 = vsel %vm609, 1, 0
        %v674 = vsel %vm610, 1, 0
        %v675 = vsel %vm611, 1, 0
        %v676 = vsel %vm612, 1, 0
        %v677 = vsel %vm613, 1, 0
        %v678 = vsel %vm614, 1, 0
        %v679 = vsel %vm615, 1, 0
        %v680 = vsel %vm616, 1, 0
        %v681 = vsel %vm617, 1, 0
        %v682 = vsel %vm618, 1, 0
        %v683 = vsel %vm619, 1, 0
        %v684 = vsel %vm620, 1, 0
        %v685 = vsel %vm621, 1, 0
        %v686 = vsel %vm622, 1, 0
        %v687 = vsel %vm623, 1, 0
        %v688 = vsel %vm624, 1, 0
        %v689 = vsel %vm625, 1, 0
        %v690 = vsel %vm626, 1, 0
        %v691 = vsel %vm627, 1, 0
        %v692 = vsel %vm628, 1, 0
        %v693 = vsel %vm629, 1, 0
        %v694 = vsel %vm630, 1, 0
        %v695 = vsel %vm631, 1, 0
        %v696 = vsel %vm632, 1, 0
        %v697 = vsel %vm633, 1, 0
        %v698 = vcvt.s32.f32 %v634
        %v699 = vcvt.s32.f32 %v635
        %v700 = vcvt.s32.f32 %v636
        %v701 = vcvt.s32.f32 %v637
        %v702 = vcvt.s32.f32 %v638
        %v703 = vcvt.s32.f32 %v639
        %v704 = vcvt.s32.f32 %v640
        %v705 = vcvt.s32.f32 %v641
        %v706 = vcvt.s32.f32 %v642
        %v707 = vcvt.s32.f32 %v643
        %v708 = vcvt.s32.f32 %v644
        %v709 = vcvt.s32.f32 %v645
        %v710 = vcvt.s32.f32 %v646
        %v711 = vcvt.s32.f32 %v647
        %v712 = vcvt.s32.f32 %v648
        %v713 = vcvt.s32.f32 %v649
        %v714 = vcvt.s32.f32 %v650
        %v715 = vcvt.s32.f32 %v651
        %v716 = vcvt.s32.f32 %v652
        %v717 = vcvt.s32.f32 %v653
        %v718 = vcvt.s32.f32 %v654
        %v719 = vcvt.s32.f32 %v655
        %v720 = vcvt.s32.f32 %v656
        %v721 = vcvt.s32.f32 %v657
        %v722 = vcvt.s32.f32 %v658
        %v723 = vcvt.s32.f32 %v659
        %v724 = vcvt.s32.f32 %v660
        %v725 = vcvt.s32.f32 %v661
        %v726 = vcvt.s32.f32 %v662
        %v727 = vcvt.s32.f32 %v663
        %v728 = vcvt.s32.f32 %v664
        %v729 = vcvt.s32.f32 %v665
        %v730 = vcvt.s32.f32 %v666
        %v731 = vcvt.s32.f32 %v667
        %v732 = vcvt.s32.f32 %v668
        %v733 = vcvt.s32.f32 %v669
        %v734 = vcvt.s32.f32 %v670
        %v735 = vcvt.s32.f32 %v671
        %v736 = vcvt.s32.f32 %v672
        %v737 = vcvt.s32.f32 %v673
        %v738 = vcvt.s32.f32 %v674
        %v739 = vcvt.s32.f32 %v675
        %v740 = vcvt.s32.f32 %v676
        %v741 = vcvt.s32.f32 %v677
        %v742 = vcvt.s32.f32 %v678
        %v743 = vcvt.s32.f32 %v679
        %v744 = vcvt.s32.f32 %v680
        %v745 = vcvt.s32.f32 %v681
        %v746 = vcvt.s32.f32 %v682
        %v747 = vcvt.s32.f32 %v683
        %v748 = vcvt.s32.f32 %v684
        %v749 = vcvt.s32.f32 %v685
        %v750 = vcvt.s32.f32 %v686
        %v751 = vcvt.s32.f32 %v687
        %v752 = vcvt.s32.f32 %v688
        %v753 = vcvt.s32.f32 %v689
        %v754 = vcvt.s32.f32 %v690
        %v755 = vcvt.s32.f32 %v691
        %v756 = vcvt.s32.f32 %v692
        %v757 = vcvt.s32.f32 %v693
        %v758 = vcvt.s32.f32 %v694
        %v759 = vcvt.s32.f32 %v695
        %v760 = vcvt.s32.f32 %v696
        %v761 = vcvt.s32.f32 %v697
        %v762 = vlaneseq
        %v763 = vshrl.u32 %v762, 7
        %v764 = vsub.s32 2, %v763
        %v765 = vrot.slane %v295, %v764
        %v766 = vlaneseq
        %v767 = vshrl.u32 %v766, 7
        %v768 = vsub.s32 6, %v767
        %v769 = vrot.slane %v295, %v768
        %v770 = vlaneseq
        %v771 = vshrl.u32 %v770, 7
        %v772 = vsub.s32 2, %v771
        %v773 = vrot.slane %v296, %v772
        %v774 = vlaneseq
        %v775 = vshrl.u32 %v774, 7
        %v776 = vsub.s32 6, %v775
        %v777 = vrot.slane %v296, %v776
        %v778 = vlaneseq
        %v779 = vshrl.u32 %v778, 7
        %v780 = vsub.s32 2, %v779
        %v781 = vrot.slane %v765, %v780
        %v782 = vlaneseq
        %v783 = vshrl.u32 %v782, 7
        %v784 = vsub.s32 2, %v783
        %v785 = vrot.slane %v769, %v784
        %v786 = vlaneseq
        %v787 = vshrl.u32 %v786, 7
        %v788 = vsub.s32 2, %v787
        %v789 = vrot.slane %v773, %v788
        %v790 = vlaneseq
        %v791 = vshrl.u32 %v790, 7
        %v792 = vsub.s32 2, %v791
        %v793 = vrot.slane %v777, %v792
        %vm794 = vcmp.eq.s32.totalorder %v298, %v781
        %vm795 = vcmp.eq.s32.totalorder %v298, %v785
        %vm796 = vcmp.eq.s32.totalorder %v298, %v789
        %vm797 = vcmp.eq.s32.totalorder %v298, %v793
        %vm798 = vcmp.eq.s32.totalorder %v299, %v781
        %vm799 = vcmp.eq.s32.totalorder %v299, %v785
        %vm800 = vcmp.eq.s32.totalorder %v299, %v789
        %vm801 = vcmp.eq.s32.totalorder %v299, %v793
        %vm802 = vcmp.eq.s32.totalorder %v300, %v781
        %vm803 = vcmp.eq.s32.totalorder %v300, %v785
        %vm804 = vcmp.eq.s32.totalorder %v300, %v789
        %vm805 = vcmp.eq.s32.totalorder %v300, %v793
        %vm806 = vcmp.eq.s32.totalorder %v301, %v781
        %vm807 = vcmp.eq.s32.totalorder %v301, %v785
        %vm808 = vcmp.eq.s32.totalorder %v301, %v789
        %vm809 = vcmp.eq.s32.totalorder %v301, %v793
        %vm810 = vcmp.eq.s32.totalorder %v302, %v781
        %vm811 = vcmp.eq.s32.totalorder %v302, %v785
        %vm812 = vcmp.eq.s32.totalorder %v302, %v789
        %vm813 = vcmp.eq.s32.totalorder %v302, %v793
        %vm814 = vcmp.eq.s32.totalorder %v303, %v781
        %vm815 = vcmp.eq.s32.totalorder %v303, %v785
        %vm816 = vcmp.eq.s32.totalorder %v303, %v789
        %vm817 = vcmp.eq.s32.totalorder %v303, %v793
        %vm818 = vcmp.eq.s32.totalorder %v304, %v781
        %vm819 = vcmp.eq.s32.totalorder %v304, %v785
        %vm820 = vcmp.eq.s32.totalorder %v304, %v789
        %vm821 = vcmp.eq.s32.totalorder %v304, %v793
        %vm822 = vcmp.eq.s32.totalorder %v305, %v781
        %vm823 = vcmp.eq.s32.totalorder %v305, %v785
        %vm824 = vcmp.eq.s32.totalorder %v305, %v789
        %vm825 = vcmp.eq.s32.totalorder %v305, %v793
        %vm826 = vcmp.eq.s32.totalorder %v306, %v781
        %vm827 = vcmp.eq.s32.totalorder %v306, %v785
        %vm828 = vcmp.eq.s32.totalorder %v306, %v789
        %vm829 = vcmp.eq.s32.totalorder %v306, %v793
        %vm830 = vcmp.eq.s32.totalorder %v307, %v781
        %vm831 = vcmp.eq.s32.totalorder %v307, %v785
        %vm832 = vcmp.eq.s32.totalorder %v307, %v789
        %vm833 = vcmp.eq.s32.totalorder %v307, %v793
        %vm834 = vcmp.eq.s32.totalorder %v308, %v781
        %vm835 = vcmp.eq.s32.totalorder %v308, %v785
        %vm836 = vcmp.eq.s32.totalorder %v308, %v789
        %vm837 = vcmp.eq.s32.totalorder %v308, %v793
        %vm838 = vcmp.eq.s32.totalorder %v309, %v781
        %vm839 = vcmp.eq.s32.totalorder %v309, %v785
        %vm840 = vcmp.eq.s32.totalorder %v309, %v789
        %vm841 = vcmp.eq.s32.totalorder %v309, %v793
        %vm842 = vcmp.eq.s32.totalorder %v310, %v781
        %vm843 = vcmp.eq.s32.totalorder %v310, %v785
        %vm844 = vcmp.eq.s32.totalorder %v310, %v789
        %vm845 = vcmp.eq.s32.totalorder %v310, %v793
        %vm846 = vcmp.eq.s32.totalorder %v311, %v781
        %vm847 = vcmp.eq.s32.totalorder %v311, %v785
        %vm848 = vcmp.eq.s32.totalorder %v311, %v789
        %vm849 = vcmp.eq.s32.totalorder %v311, %v793
        %vm850 = vcmp.eq.s32.totalorder %v312, %v781
        %vm851 = vcmp.eq.s32.totalorder %v312, %v785
        %vm852 = vcmp.eq.s32.totalorder %v312, %v789
        %vm853 = vcmp.eq.s32.totalorder %v312, %v793
        %vm854 = vcmp.eq.s32.totalorder %v313, %v781
        %vm855 = vcmp.eq.s32.totalorder %v313, %v785
        %vm856 = vcmp.eq.s32.totalorder %v313, %v789
        %vm857 = vcmp.eq.s32.totalorder %v313, %v793
        %v858 = vsel %vm794, 1, 0
        %v859 = vsel %vm795, 1, 0
        %v860 = vsel %vm796, 1, 0
        %v861 = vsel %vm797, 1, 0
        %v862 = vsel %vm798, 1, 0
        %v863 = vsel %vm799, 1, 0
        %v864 = vsel %vm800, 1, 0
        %v865 = vsel %vm801, 1, 0
        %v866 = vsel %vm802, 1, 0
        %v867 = vsel %vm803, 1, 0
        %v868 = vsel %vm804, 1, 0
        %v869 = vsel %vm805, 1, 0
        %v870 = vsel %vm806, 1, 0
        %v871 = vsel %vm807, 1, 0
        %v872 = vsel %vm808, 1, 0
        %v873 = vsel %vm809, 1, 0
        %v874 = vsel %vm810, 1, 0
        %v875 = vsel %vm811, 1, 0
        %v876 = vsel %vm812, 1, 0
        %v877 = vsel %vm813, 1, 0
        %v878 = vsel %vm814, 1, 0
        %v879 = vsel %vm815, 1, 0
        %v880 = vsel %vm816, 1, 0
        %v881 = vsel %vm817, 1, 0
        %v882 = vsel %vm818, 1, 0
        %v883 = vsel %vm819, 1, 0
        %v884 = vsel %vm820, 1, 0
        %v885 = vsel %vm821, 1, 0
        %v886 = vsel %vm822, 1, 0
        %v887 = vsel %vm823, 1, 0
        %v888 = vsel %vm824, 1, 0
        %v889 = vsel %vm825, 1, 0
        %v890 = vsel %vm826, 1, 0
        %v891 = vsel %vm827, 1, 0
        %v892 = vsel %vm828, 1, 0
        %v893 = vsel %vm829, 1, 0
        %v894 = vsel %vm830, 1, 0
        %v895 = vsel %vm831, 1, 0
        %v896 = vsel %vm832, 1, 0
        %v897 = vsel %vm833, 1, 0
        %v898 = vsel %vm834, 1, 0
        %v899 = vsel %vm835, 1, 0
        %v900 = vsel %vm836, 1, 0
        %v901 = vsel %vm837, 1, 0
        %v902 = vsel %vm838, 1, 0
        %v903 = vsel %vm839, 1, 0
        %v904 = vsel %vm840, 1, 0
        %v905 = vsel %vm841, 1, 0
        %v906 = vsel %vm842, 1, 0
        %v907 = vsel %vm843, 1, 0
        %v908 = vsel %vm844, 1, 0
        %v909 = vsel %vm845, 1, 0
        %v910 = vsel %vm846, 1, 0
        %v911 = vsel %vm847, 1, 0
        %v912 = vsel %vm848, 1, 0
        %v913 = vsel %vm849, 1, 0
        %v914 = vsel %vm850, 1, 0
        %v915 = vsel %vm851, 1, 0
        %v916 = vsel %vm852, 1, 0
        %v917 = vsel %vm853, 1, 0
        %v918 = vsel %vm854, 1, 0
        %v919 = vsel %vm855, 1, 0
        %v920 = vsel %vm856, 1, 0
        %v921 = vsel %vm857, 1, 0
        %v922 = vcvt.s32.f32 %v858
        %v923 = vcvt.s32.f32 %v859
        %v924 = vcvt.s32.f32 %v860
        %v925 = vcvt.s32.f32 %v861
        %v926 = vcvt.s32.f32 %v862
        %v927 = vcvt.s32.f32 %v863
        %v928 = vcvt.s32.f32 %v864
        %v929 = vcvt.s32.f32 %v865
        %v930 = vcvt.s32.f32 %v866
        %v931 = vcvt.s32.f32 %v867
        %v932 = vcvt.s32.f32 %v868
        %v933 = vcvt.s32.f32 %v869
        %v934 = vcvt.s32.f32 %v870
        %v935 = vcvt.s32.f32 %v871
        %v936 = vcvt.s32.f32 %v872
        %v937 = vcvt.s32.f32 %v873
        %v938 = vcvt.s32.f32 %v874
        %v939 = vcvt.s32.f32 %v875
        %v940 = vcvt.s32.f32 %v876
        %v941 = vcvt.s32.f32 %v877
        %v942 = vcvt.s32.f32 %v878
        %v943 = vcvt.s32.f32 %v879
        %v944 = vcvt.s32.f32 %v880
        %v945 = vcvt.s32.f32 %v881
        %v946 = vcvt.s32.f32 %v882
        %v947 = vcvt.s32.f32 %v883
        %v948 = vcvt.s32.f32 %v884
        %v949 = vcvt.s32.f32 %v885
        %v950 = vcvt.s32.f32 %v886
        %v951 = vcvt.s32.f32 %v887
        %v952 = vcvt.s32.f32 %v888
        %v953 = vcvt.s32.f32 %v889
        %v954 = vcvt.s32.f32 %v890
        %v955 = vcvt.s32.f32 %v891
        %v956 = vcvt.s32.f32 %v892
        %v957 = vcvt.s32.f32 %v893
        %v958 = vcvt.s32.f32 %v894
        %v959 = vcvt.s32.f32 %v895
        %v960 = vcvt.s32.f32 %v896
        %v961 = vcvt.s32.f32 %v897
        %v962 = vcvt.s32.f32 %v898
        %v963 = vcvt.s32.f32 %v899
        %v964 = vcvt.s32.f32 %v900
        %v965 = vcvt.s32.f32 %v901
        %v966 = vcvt.s32.f32 %v902
        %v967 = vcvt.s32.f32 %v903
        %v968 = vcvt.s32.f32 %v904
        %v969 = vcvt.s32.f32 %v905
        %v970 = vcvt.s32.f32 %v906
        %v971 = vcvt.s32.f32 %v907
        %v972 = vcvt.s32.f32 %v908
        %v973 = vcvt.s32.f32 %v909
        %v974 = vcvt.s32.f32 %v910
        %v975 = vcvt.s32.f32 %v911
        %v976 = vcvt.s32.f32 %v912
        %v977 = vcvt.s32.f32 %v913
        %v978 = vcvt.s32.f32 %v914
        %v979 = vcvt.s32.f32 %v915
        %v980 = vcvt.s32.f32 %v916
        %v981 = vcvt.s32.f32 %v917
        %v982 = vcvt.s32.f32 %v918
        %v983 = vcvt.s32.f32 %v919
        %v984 = vcvt.s32.f32 %v920
        %v985 = vcvt.s32.f32 %v921
        %v986 = vlaneseq
        %v987 = vshrl.u32 %v986, 7
        %v988 = vsub.s32 3, %v987
        %v989 = vrot.slane %v295, %v988
        %v990 = vlaneseq
        %v991 = vshrl.u32 %v990, 7
        %v992 = vsub.s32 7, %v991
        %v993 = vrot.slane %v295, %v992
        %v994 = vlaneseq
        %v995 = vshrl.u32 %v994, 7
        %v996 = vsub.s32 3, %v995
        %v997 = vrot.slane %v296, %v996
        %v998 = vlaneseq
        %v999 = vshrl.u32 %v998, 7
        %v1000 = vsub.s32 7, %v999
        %v1001 = vrot.slane %v296, %v1000
        %v1002 = vlaneseq
        %v1003 = vshrl.u32 %v1002, 7
        %v1004 = vsub.s32 3, %v1003
        %v1005 = vrot.slane %v989, %v1004
        %v1006 = vlaneseq
        %v1007 = vshrl.u32 %v1006, 7
        %v1008 = vsub.s32 3, %v1007
        %v1009 = vrot.slane %v993, %v1008
        %v1010 = vlaneseq
        %v1011 = vshrl.u32 %v1010, 7
        %v1012 = vsub.s32 3, %v1011
        %v1013 = vrot.slane %v997, %v1012
        %v1014 = vlaneseq
        %v1015 = vshrl.u32 %v1014, 7
        %v1016 = vsub.s32 3, %v1015
        %v1017 = vrot.slane %v1001, %v1016
        %vm1018 = vcmp.eq.s32.totalorder %v298, %v1005
        %vm1019 = vcmp.eq.s32.totalorder %v298, %v1009
        %vm1020 = vcmp.eq.s32.totalorder %v298, %v1013
        %vm1021 = vcmp.eq.s32.totalorder %v298, %v1017
        %vm1022 = vcmp.eq.s32.totalorder %v299, %v1005
        %vm1023 = vcmp.eq.s32.totalorder %v299, %v1009
        %vm1024 = vcmp.eq.s32.totalorder %v299, %v1013
        %vm1025 = vcmp.eq.s32.totalorder %v299, %v1017
        %vm1026 = vcmp.eq.s32.totalorder %v300, %v1005
        %vm1027 = vcmp.eq.s32.totalorder %v300, %v1009
        %vm1028 = vcmp.eq.s32.totalorder %v300, %v1013
        %vm1029 = vcmp.eq.s32.totalorder %v300, %v1017
        %vm1030 = vcmp.eq.s32.totalorder %v301, %v1005
        %vm1031 = vcmp.eq.s32.totalorder %v301, %v1009
        %vm1032 = vcmp.eq.s32.totalorder %v301, %v1013
        %vm1033 = vcmp.eq.s32.totalorder %v301, %v1017
        %vm1034 = vcmp.eq.s32.totalorder %v302, %v1005
        %vm1035 = vcmp.eq.s32.totalorder %v302, %v1009
        %vm1036 = vcmp.eq.s32.totalorder %v302, %v1013
        %vm1037 = vcmp.eq.s32.totalorder %v302, %v1017
        %vm1038 = vcmp.eq.s32.totalorder %v303, %v1005
        %vm1039 = vcmp.eq.s32.totalorder %v303, %v1009
        %vm1040 = vcmp.eq.s32.totalorder %v303, %v1013
        %vm1041 = vcmp.eq.s32.totalorder %v303, %v1017
        %vm1042 = vcmp.eq.s32.totalorder %v304, %v1005
        %vm1043 = vcmp.eq.s32.totalorder %v304, %v1009
        %vm1044 = vcmp.eq.s32.totalorder %v304, %v1013
        %vm1045 = vcmp.eq.s32.totalorder %v304, %v1017
        %vm1046 = vcmp.eq.s32.totalorder %v305, %v1005
        %vm1047 = vcmp.eq.s32.totalorder %v305, %v1009
        %vm1048 = vcmp.eq.s32.totalorder %v305, %v1013
        %vm1049 = vcmp.eq.s32.totalorder %v305, %v1017
        %vm1050 = vcmp.eq.s32.totalorder %v306, %v1005
        %vm1051 = vcmp.eq.s32.totalorder %v306, %v1009
        %vm1052 = vcmp.eq.s32.totalorder %v306, %v1013
        %vm1053 = vcmp.eq.s32.totalorder %v306, %v1017
        %vm1054 = vcmp.eq.s32.totalorder %v307, %v1005
        %vm1055 = vcmp.eq.s32.totalorder %v307, %v1009
        %vm1056 = vcmp.eq.s32.totalorder %v307, %v1013
        %vm1057 = vcmp.eq.s32.totalorder %v307, %v1017
        %vm1058 = vcmp.eq.s32.totalorder %v308, %v1005
        %vm1059 = vcmp.eq.s32.totalorder %v308, %v1009
        %vm1060 = vcmp.eq.s32.totalorder %v308, %v1013
        %vm1061 = vcmp.eq.s32.totalorder %v308, %v1017
        %vm1062 = vcmp.eq.s32.totalorder %v309, %v1005
        %vm1063 = vcmp.eq.s32.totalorder %v309, %v1009
        %vm1064 = vcmp.eq.s32.totalorder %v309, %v1013
        %vm1065 = vcmp.eq.s32.totalorder %v309, %v1017
        %vm1066 = vcmp.eq.s32.totalorder %v310, %v1005
        %vm1067 = vcmp.eq.s32.totalorder %v310, %v1009
        %vm1068 = vcmp.eq.s32.totalorder %v310, %v1013
        %vm1069 = vcmp.eq.s32.totalorder %v310, %v1017
        %vm1070 = vcmp.eq.s32.totalorder %v311, %v1005
        %vm1071 = vcmp.eq.s32.totalorder %v311, %v1009
        %vm1072 = vcmp.eq.s32.totalorder %v311, %v1013
        %vm1073 = vcmp.eq.s32.totalorder %v311, %v1017
        %vm1074 = vcmp.eq.s32.totalorder %v312, %v1005
        %vm1075 = vcmp.eq.s32.totalorder %v312, %v1009
        %vm1076 = vcmp.eq.s32.totalorder %v312, %v1013
        %vm1077 = vcmp.eq.s32.totalorder %v312, %v1017
        %vm1078 = vcmp.eq.s32.totalorder %v313, %v1005
        %vm1079 = vcmp.eq.s32.totalorder %v313, %v1009
        %vm1080 = vcmp.eq.s32.totalorder %v313, %v1013
        %vm1081 = vcmp.eq.s32.totalorder %v313, %v1017
        %v1082 = vsel %vm1018, 1, 0
        %v1083 = vsel %vm1019, 1, 0
        %v1084 = vsel %vm1020, 1, 0
        %v1085 = vsel %vm1021, 1, 0
        %v1086 = vsel %vm1022, 1, 0
        %v1087 = vsel %vm1023, 1, 0
        %v1088 = vsel %vm1024, 1, 0
        %v1089 = vsel %vm1025, 1, 0
        %v1090 = vsel %vm1026, 1, 0
        %v1091 = vsel %vm1027, 1, 0
        %v1092 = vsel %vm1028, 1, 0
        %v1093 = vsel %vm1029, 1, 0
        %v1094 = vsel %vm1030, 1, 0
        %v1095 = vsel %vm1031, 1, 0
        %v1096 = vsel %vm1032, 1, 0
        %v1097 = vsel %vm1033, 1, 0
        %v1098 = vsel %vm1034, 1, 0
        %v1099 = vsel %vm1035, 1, 0
        %v1100 = vsel %vm1036, 1, 0
        %v1101 = vsel %vm1037, 1, 0
        %v1102 = vsel %vm1038, 1, 0
        %v1103 = vsel %vm1039, 1, 0
        %v1104 = vsel %vm1040, 1, 0
        %v1105 = vsel %vm1041, 1, 0
        %v1106 = vsel %vm1042, 1, 0
        %v1107 = vsel %vm1043, 1, 0
        %v1108 = vsel %vm1044, 1, 0
        %v1109 = vsel %vm1045, 1, 0
        %v1110 = vsel %vm1046, 1, 0
        %v1111 = vsel %vm1047, 1, 0
        %v1112 = vsel %vm1048, 1, 0
        %v1113 = vsel %vm1049, 1, 0
        %v1114 = vsel %vm1050, 1, 0
        %v1115 = vsel %vm1051, 1, 0
        %v1116 = vsel %vm1052, 1, 0
        %v1117 = vsel %vm1053, 1, 0
        %v1118 = vsel %vm1054, 1, 0
        %v1119 = vsel %vm1055, 1, 0
        %v1120 = vsel %vm1056, 1, 0
        %v1121 = vsel %vm1057, 1, 0
        %v1122 = vsel %vm1058, 1, 0
        %v1123 = vsel %vm1059, 1, 0
        %v1124 = vsel %vm1060, 1, 0
        %v1125 = vsel %vm1061, 1, 0
        %v1126 = vsel %vm1062, 1, 0
        %v1127 = vsel %vm1063, 1, 0
        %v1128 = vsel %vm1064, 1, 0
        %v1129 = vsel %vm1065, 1, 0
        %v1130 = vsel %vm1066, 1, 0
        %v1131 = vsel %vm1067, 1, 0
        %v1132 = vsel %vm1068, 1, 0
        %v1133 = vsel %vm1069, 1, 0
        %v1134 = vsel %vm1070, 1, 0
        %v1135 = vsel %vm1071, 1, 0
        %v1136 = vsel %vm1072, 1, 0
        %v1137 = vsel %vm1073, 1, 0
        %v1138 = vsel %vm1074, 1, 0
        %v1139 = vsel %vm1075, 1, 0
        %v1140 = vsel %vm1076, 1, 0
        %v1141 = vsel %vm1077, 1, 0
        %v1142 = vsel %vm1078, 1, 0
        %v1143 = vsel %vm1079, 1, 0
        %v1144 = vsel %vm1080, 1, 0
        %v1145 = vsel %vm1081, 1, 0
        %v1146 = vcvt.s32.f32 %v1082
        %v1147 = vcvt.s32.f32 %v1083
        %v1148 = vcvt.s32.f32 %v1084
        %v1149 = vcvt.s32.f32 %v1085
        %v1150 = vcvt.s32.f32 %v1086
        %v1151 = vcvt.s32.f32 %v1087
        %v1152 = vcvt.s32.f32 %v1088
        %v1153 = vcvt.s32.f32 %v1089
        %v1154 = vcvt.s32.f32 %v1090
        %v1155 = vcvt.s32.f32 %v1091
        %v1156 = vcvt.s32.f32 %v1092
        %v1157 = vcvt.s32.f32 %v1093
        %v1158 = vcvt.s32.f32 %v1094
        %v1159 = vcvt.s32.f32 %v1095
        %v1160 = vcvt.s32.f32 %v1096
        %v1161 = vcvt.s32.f32 %v1097
        %v1162 = vcvt.s32.f32 %v1098
        %v1163 = vcvt.s32.f32 %v1099
        %v1164 = vcvt.s32.f32 %v1100
        %v1165 = vcvt.s32.f32 %v1101
        %v1166 = vcvt.s32.f32 %v1102
        %v1167 = vcvt.s32.f32 %v1103
        %v1168 = vcvt.s32.f32 %v1104
        %v1169 = vcvt.s32.f32 %v1105
        %v1170 = vcvt.s32.f32 %v1106
        %v1171 = vcvt.s32.f32 %v1107
        %v1172 = vcvt.s32.f32 %v1108
        %v1173 = vcvt.s32.f32 %v1109
        %v1174 = vcvt.s32.f32 %v1110
        %v1175 = vcvt.s32.f32 %v1111
        %v1176 = vcvt.s32.f32 %v1112
        %v1177 = vcvt.s32.f32 %v1113
        %v1178 = vcvt.s32.f32 %v1114
        %v1179 = vcvt.s32.f32 %v1115
        %v1180 = vcvt.s32.f32 %v1116
        %v1181 = vcvt.s32.f32 %v1117
        %v1182 = vcvt.s32.f32 %v1118
        %v1183 = vcvt.s32.f32 %v1119
        %v1184 = vcvt.s32.f32 %v1120
        %v1185 = vcvt.s32.f32 %v1121
        %v1186 = vcvt.s32.f32 %v1122
        %v1187 = vcvt.s32.f32 %v1123
        %v1188 = vcvt.s32.f32 %v1124
        %v1189 = vcvt.s32.f32 %v1125
        %v1190 = vcvt.s32.f32 %v1126
        %v1191 = vcvt.s32.f32 %v1127
        %v1192 = vcvt.s32.f32 %v1128
        %v1193 = vcvt.s32.f32 %v1129
        %v1194 = vcvt.s32.f32 %v1130
        %v1195 = vcvt.s32.f32 %v1131
        %v1196 = vcvt.s32.f32 %v1132
        %v1197 = vcvt.s32.f32 %v1133
        %v1198 = vcvt.s32.f32 %v1134
        %v1199 = vcvt.s32.f32 %v1135
        %v1200 = vcvt.s32.f32 %v1136
        %v1201 = vcvt.s32.f32 %v1137
        %v1202 = vcvt.s32.f32 %v1138
        %v1203 = vcvt.s32.f32 %v1139
        %v1204 = vcvt.s32.f32 %v1140
        %v1205 = vcvt.s32.f32 %v1141
        %v1206 = vcvt.s32.f32 %v1142
        %v1207 = vcvt.s32.f32 %v1143
        %v1208 = vcvt.s32.f32 %v1144
        %v1209 = vcvt.s32.f32 %v1145
        %v1210 = vld [vmem:[#allocation3] sm:$0xff]
        %v1211 = vld [vmem:[#allocation3 + $0x8] sm:$0xff]
        %v1212 = vld [vmem:[#allocation3 + $0x10] sm:$0xff]
        %v1213 = vld [vmem:[#allocation3 + $0x18] sm:$0xff]
        %v1214 = vld [vmem:[#allocation3 + $0x20] sm:$0xff]
        %v1215 = vld [vmem:[#allocation3 + $0x28] sm:$0xff]
        %v1216 = vld [vmem:[#allocation3 + $0x30] sm:$0xff]
        %v1217 = vld [vmem:[#allocation3 + $0x38] sm:$0xff]
        %v1218 = vld [vmem:[#allocation3 + $0x40] sm:$0xff]
        %v1219 = vld [vmem:[#allocation3 + $0x48] sm:$0xff]
        %v1220 = vld [vmem:[#allocation3 + $0x50] sm:$0xff]
        %v1221 = vld [vmem:[#allocation3 + $0x58] sm:$0xff]
        %v1222 = vld [vmem:[#allocation3 + $0x60] sm:$0xff]
        %v1223 = vld [vmem:[#allocation3 + $0x68] sm:$0xff]
        %v1224 = vld [vmem:[#allocation3 + $0x70] sm:$0xff]
        %v1225 = vld [vmem:[#allocation3 + $0x78] sm:$0xff]
        %v1226 = vld [vmem:[#allocation3 + $0x80] sm:$0xff]
        %v1227 = vld [vmem:[#allocation3 + $0x88] sm:$0xff]
        %v1228 = vld [vmem:[#allocation3 + $0x90] sm:$0xff]
        %v1229 = vld [vmem:[#allocation3 + $0x98] sm:$0xff]
        %v1230 = vld [vmem:[#allocation3 + $0xa0] sm:$0xff]
        %v1231 = vld [vmem:[#allocation3 + $0xa8] sm:$0xff]
        %v1232 = vld [vmem:[#allocation3 + $0xb0] sm:$0xff]
        %v1233 = vld [vmem:[#allocation3 + $0xb8] sm:$0xff]
        %v1234 = vld [vmem:[#allocation3 + $0xc0] sm:$0xff]
        %v1235 = vld [vmem:[#allocation3 + $0xc8] sm:$0xff]
        %v1236 = vld [vmem:[#allocation3 + $0xd0] sm:$0xff]
        %v1237 = vld [vmem:[#allocation3 + $0xd8] sm:$0xff]
        %v1238 = vld [vmem:[#allocation3 + $0xe0] sm:$0xff]
        %v1239 = vld [vmem:[#allocation3 + $0xe8] sm:$0xff]
        %v1240 = vld [vmem:[#allocation3 + $0xf0] sm:$0xff]
        %v1241 = vld [vmem:[#allocation3 + $0xf8] sm:$0xff]
        %v1242 = vld [vmem:[#allocation3 + $0x100] sm:$0xff]
        %v1243 = vld [vmem:[#allocation3 + $0x108] sm:$0xff]
        %v1244 = vld [vmem:[#allocation3 + $0x110] sm:$0xff]
        %v1245 = vld [vmem:[#allocation3 + $0x118] sm:$0xff]
        %v1246 = vld [vmem:[#allocation3 + $0x120] sm:$0xff]
        %v1247 = vld [vmem:[#allocation3 + $0x128] sm:$0xff]
        %v1248 = vld [vmem:[#allocation3 + $0x130] sm:$0xff]
        %v1249 = vld [vmem:[#allocation3 + $0x138] sm:$0xff]
        %v1250 = vld [vmem:[#allocation3 + $0x140] sm:$0xff]
        %v1251 = vld [vmem:[#allocation3 + $0x148] sm:$0xff]
        %v1252 = vld [vmem:[#allocation3 + $0x150] sm:$0xff]
        %v1253 = vld [vmem:[#allocation3 + $0x158] sm:$0xff]
        %v1254 = vld [vmem:[#allocation3 + $0x160] sm:$0xff]
        %v1255 = vld [vmem:[#allocation3 + $0x168] sm:$0xff]
        %v1256 = vld [vmem:[#allocation3 + $0x170] sm:$0xff]
        %v1257 = vld [vmem:[#allocation3 + $0x178] sm:$0xff]
        %v1258 = vld [vmem:[#allocation3 + $0x180] sm:$0xff]
        %v1259 = vld [vmem:[#allocation3 + $0x188] sm:$0xff]
        %v1260 = vld [vmem:[#allocation3 + $0x190] sm:$0xff]
        %v1261 = vld [vmem:[#allocation3 + $0x198] sm:$0xff]
        %1262 = vmatprep.subr.mxu0 %v475
        %1263 = vmatpush1.msra.mxu0 %v474
        %1264 = vmatprep.subr.mxu0 %v479
        %1265 = vmatpush1.msra.mxu0 %v478
        %1266 = vmatprep.subr.mxu0 %v483
        %1267 = vmatpush1.msra.mxu0 %v482
        %1268 = vmatprep.subr.mxu0 %v487
        %1269 = vmatpush1.msra.mxu0 %v486
        %1270 = vmatprep.subr.mxu0 %v491
        %1271 = vmatpush1.msra.mxu0 %v490
        %1272 = vmatprep.subr.mxu0 %v495
        %1273 = vmatpush1.msra.mxu0 %v494
        %1274 = vmatprep.subr.mxu0 %v499
        %1275 = vmatpush1.msra.mxu0 %v498
        %1276 = vmatprep.subr.mxu0 %v503
        %1277 = vmatpush1.msra.mxu0 %v502
        %1278 = vmatprep.subr.mxu0 %v507
        %1279 = vmatpush1.msra.mxu0 %v506
        %1280 = vmatprep.subr.mxu0 %v511
        %1281 = vmatpush1.msra.mxu0 %v510
        %1282 = vmatprep.subr.mxu0 %v515
        %1283 = vmatpush1.msra.mxu0 %v514
        %1284 = vmatprep.subr.mxu0 %v519
        %1285 = vmatpush1.msra.mxu0 %v518
        %1286 = vmatprep.subr.mxu0 %v523
        %1287 = vmatpush1.msra.mxu0 %v522
        %1288 = vmatprep.subr.mxu0 %v527
        %1289 = vmatpush1.msra.mxu0 %v526
        %1290 = vmatprep.subr.mxu0 %v531
        %1291 = vmatpush1.msra.mxu0 %v530
        %1292 = vmatprep.subr.mxu0 %v535
        %1293 = vmatpush1.msra.mxu0 %v534
        %1294 = vmatprep.subr.mxu0 %v699
        %1295 = vmatpush1.msra.mxu0 %v698
        %1296 = vmatprep.subr.mxu0 %v703
        %1297 = vmatpush1.msra.mxu0 %v702
        %1298 = vmatprep.subr.mxu0 %v707
        %1299 = vmatpush1.msra.mxu0 %v706
        %1300 = vmatprep.subr.mxu0 %v711
        %1301 = vmatpush1.msra.mxu0 %v710
        %1302 = vmatprep.subr.mxu0 %v715
        %1303 = vmatpush1.msra.mxu0 %v714
        %1304 = vmatprep.subr.mxu0 %v719
        %1305 = vmatpush1.msra.mxu0 %v718
        %1306 = vmatprep.subr.mxu0 %v723
        %1307 = vmatpush1.msra.mxu0 %v722
        %1308 = vmatprep.subr.mxu0 %v727
        %1309 = vmatpush1.msra.mxu0 %v726
        %1310 = vmatprep.subr.mxu0 %v731
        %1311 = vmatpush1.msra.mxu0 %v730
        %1312 = vmatprep.subr.mxu0 %v735
        %1313 = vmatpush1.msra.mxu0 %v734
        %1314 = vmatprep.subr.mxu0 %v739
        %1315 = vmatpush1.msra.mxu0 %v738
        %1316 = vmatprep.subr.mxu0 %v743
        %1317 = vmatpush1.msra.mxu0 %v742
        %1318 = vmatprep.subr.mxu0 %v747
        %1319 = vmatpush1.msra.mxu0 %v746
        %1320 = vmatprep.subr.mxu0 %v751
        %1321 = vmatpush1.msra.mxu0 %v750
        %1322 = vmatprep.subr.mxu0 %v755
        %1323 = vmatpush1.msra.mxu0 %v754
        %1324 = vmatprep.subr.mxu0 %v759
        %1325 = vmatpush1.msra.mxu0 %v758
        %1326 = vmatprep.mubr.f32.mxu0 %v1211
        %1327 = vmatmul.mubr.f32.gmra.mrb[0].mxu0 %v1210
        %v1328 = vpop.f32.mrb[0].mxu0
        %v1329 = vadd.f32 0.0, %v1328
        %v1330 = vpop.f32.mrb[0].mxu0
        %v1331 = vadd.f32 0.0, %v1330
        %1332 = vmatprep.mubr.f32.mxu0 %v1215
        %1333 = vmatmul.mubr.f32.gmra.mrb[0].mxu0 %v1214
        %v1334 = vpop.f32.mrb[0].mxu0
        %v1335 = vadd.f32 0.0, %v1334
        %v1336 = vpop.f32.mrb[0].mxu0
        %v1337 = vadd.f32 0.0, %v1336
        %1338 = vmatprep.mubr.f32.mxu0 %v1219
        %1339 = vmatmul.mubr.f32.gmra.mrb[0].mxu0 %v1218
        %v1340 = vpop.f32.mrb[0].mxu0
        %v1341 = vadd.f32 0.0, %v1340
        %v1342 = vpop.f32.mrb[0].mxu0
        %v1343 = vadd.f32 0.0, %v1342
        %1344 = vmatprep.mubr.f32.mxu0 %v1223
        %1345 = vmatmul.mubr.f32.gmra.mrb[0].mxu0 %v1222
        %v1346 = vpop.f32.mrb[0].mxu0
        %v1347 = vadd.f32 0.0, %v1346
        %v1348 = vpop.f32.mrb[0].mxu0
        %v1349 = vadd.f32 0.0, %v1348
        %1350 = vmatprep.mubr.f32.mxu0 %v1227
        %1351 = vmatmul.mubr.f32.gmra.mrb[0].mxu0 %v1226
        %v1352 = vpop.f32.mrb[0].mxu0
        %v1353 = vadd.f32 0.0, %v1352
        %v1354 = vpop.f32.mrb[0].mxu0
        %v1355 = vadd.f32 0.0, %v1354
        %1356 = vmatprep.mubr.f32.mxu0 %v1231
        %1357 = vmatmul.mubr.f32.gmra.mrb[0].mxu0 %v1230
        %v1358 = vpop.f32.mrb[0].mxu0
        %v1359 = vadd.f32 0.0, %v1358
        %v1360 = vpop.f32.mrb[0].mxu0
        %v1361 = vadd.f32 0.0, %v1360
        %1362 = vmatprep.mubr.f32.mxu0 %v1235
        %1363 = vmatmul.mubr.f32.gmra.mrb[0].mxu0 %v1234
        %v1364 = vpop.f32.mrb[0].mxu0
        %v1365 = vadd.f32 0.0, %v1364
        %v1366 = vpop.f32.mrb[0].mxu0
        %v1367 = vadd.f32 0.0, %v1366
        %1368 = vmatprep.mubr.f32.mxu0 %v1239
        %1369 = vmatmul.mubr.f32.gmra.mrb[0].mxu0 %v1238
        %v1370 = vpop.f32.mrb[0].mxu0
        %v1371 = vadd.f32 0.0, %v1370
        %v1372 = vpop.f32.mrb[0].mxu0
        %v1373 = vadd.f32 0.0, %v1372
        %1374 = vmatprep.mubr.f32.mxu0 %v1243
        %1375 = vmatmul.mubr.f32.gmra.mrb[0].mxu0 %v1242
        %v1376 = vpop.f32.mrb[0].mxu0
        %v1377 = vadd.f32 0.0, %v1376
        %v1378 = vpop.f32.mrb[0].mxu0
        %v1379 = vadd.f32 0.0, %v1378
        %1380 = vmatprep.mubr.f32.mxu0 %v1247
        %1381 = vmatmul.mubr.f32.gmra.mrb[0].mxu0 %v1246
        %v1382 = vpop.f32.mrb[0].mxu0
        %v1383 = vadd.f32 0.0, %v1382
        %v1384 = vpop.f32.mrb[0].mxu0
        %v1385 = vadd.f32 0.0, %v1384
        %1386 = vmatprep.mubr.f32.mxu0 %v1251
        %1387 = vmatmul.mubr.f32.gmra.mrb[0].mxu0 %v1250
        %v1388 = vpop.f32.mrb[0].mxu0
        %v1389 = vadd.f32 0.0, %v1388
        %v1390 = vpop.f32.mrb[0].mxu0
        %v1391 = vadd.f32 0.0, %v1390
        %1392 = vmatprep.mubr.f32.mxu0 %v1255
        %1393 = vmatmul.mubr.f32.gmra.mrb[0].mxu0 %v1254
        %v1394 = vpop.f32.mrb[0].mxu0
        %v1395 = vadd.f32 0.0, %v1394
        %v1396 = vpop.f32.mrb[0].mxu0
        %v1397 = vadd.f32 0.0, %v1396
        %1398 = vmatprep.mubr.f32.mxu0 %v1259
        %1399 = vmatmul.mubr.f32.gmra.mrb[0].mxu0 %v1258
        %v1400 = vpop.f32.mrb[0].mxu0
        %v1401 = vadd.f32 0.0, %v1400
        %v1402 = vpop.f32.mrb[0].mxu0
        %v1403 = vadd.f32 0.0, %v1402
        %1404 = vdwg.mxu0
        %1405 = vmatprep.subr.mxu0 %v923
        %1406 = vmatpush1.msra.mxu0 %v922
        %1407 = vmatprep.subr.mxu0 %v927
        %1408 = vmatpush1.msra.mxu0 %v926
        %1409 = vmatprep.subr.mxu0 %v931
        %1410 = vmatpush1.msra.mxu0 %v930
        %1411 = vmatprep.subr.mxu0 %v935
        %1412 = vmatpush1.msra.mxu0 %v934
        %1413 = vmatprep.subr.mxu0 %v939
        %1414 = vmatpush1.msra.mxu0 %v938
        %1415 = vmatprep.subr.mxu0 %v943
        %1416 = vmatpush1.msra.mxu0 %v942
        %1417 = vmatprep.subr.mxu0 %v947
        %1418 = vmatpush1.msra.mxu0 %v946
        %1419 = vmatprep.subr.mxu0 %v951
        %1420 = vmatpush1.msra.mxu0 %v950
        %1421 = vmatprep.subr.mxu0 %v955
        %1422 = vmatpush1.msra.mxu0 %v954
        %1423 = vmatprep.subr.mxu0 %v959
        %1424 = vmatpush1.msra.mxu0 %v958
        %1425 = vmatprep.subr.mxu0 %v963
        %1426 = vmatpush1.msra.mxu0 %v962
        %1427 = vmatprep.subr.mxu0 %v967
        %1428 = vmatpush1.msra.mxu0 %v966
        %1429 = vmatprep.subr.mxu0 %v971
        %1430 = vmatpush1.msra.mxu0 %v970
        %1431 = vmatprep.subr.mxu0 %v975
        %1432 = vmatpush1.msra.mxu0 %v974
        %1433 = vmatprep.subr.mxu0 %v979
        %1434 = vmatpush1.msra.mxu0 %v978
        %1435 = vmatprep.subr.mxu0 %v983
        %1436 = vmatpush1.msra.mxu0 %v982
        %1437 = vmatprep.subr.mxu0 %v1147
        %1438 = vmatpush1.msra.mxu0 %v1146
        %1439 = vmatprep.subr.mxu0 %v1151
        %1440 = vmatpush1.msra.mxu0 %v1150
        %1441 = vmatprep.subr.mxu0 %v1155
        %1442 = vmatpush1.msra.mxu0 %v1154
        %1443 = vmatprep.subr.mxu0 %v1159
        %1444 = vmatpush1.msra.mxu0 %v1158
        %1445 = vmatprep.subr.mxu0 %v1163
        %1446 = vmatpush1.msra.mxu0 %v1162
        %1447 = vmatprep.subr.mxu0 %v1167
        %1448 = vmatpush1.msra.mxu0 %v1166
        %1449 = vmatprep.subr.mxu0 %v1171
        %1450 = vmatpush1.msra.mxu0 %v1170
        %1451 = vmatprep.subr.mxu0 %v1175
        %1452 = vmatpush1.msra.mxu0 %v1174
        %1453 = vmatprep.subr.mxu0 %v1179
        %1454 = vmatpush1.msra.mxu0 %v1178
        %1455 = vmatprep.subr.mxu0 %v1183
        %1456 = vmatpush1.msra.mxu0 %v1182
        %1457 = vmatprep.subr.mxu0 %v1187
        %1458 = vmatpush1.msra.mxu0 %v1186
        %1459 = vmatprep.subr.mxu0 %v1191
        %1460 = vmatpush1.msra.mxu0 %v1190
        %1461 = vmatprep.subr.mxu0 %v1195
        %1462 = vmatpush1.msra.mxu0 %v1194
        %1463 = vmatprep.subr.mxu0 %v1199
        %1464 = vmatpush1.msra.mxu0 %v1198
        %1465 = vmatprep.subr.mxu0 %v1203
        %1466 = vmatpush1.msra.mxu0 %v1202
        %1467 = vmatprep.subr.mxu0 %v1207
        %1468 = vmatpush1.msra.mxu0 %v1206
        %1469 = vmatprep.mubr.f32.mxu0 %v1213
        %1470 = vmatmul.mubr.f32.gmra.mrb[0].mxu0 %v1212
        %v1471 = vpop.f32.mrb[0].mxu0
        %v1472 = vadd.f32 %v1329, %v1471
        %v1473 = vpop.f32.mrb[0].mxu0
        %v1474 = vadd.f32 %v1331, %v1473
        %1475 = vmatprep.mubr.f32.mxu0 %v1217
        %1476 = vmatmul.mubr.f32.gmra.mrb[0].mxu0 %v1216
        %v1477 = vpop.f32.mrb[0].mxu0
        %v1478 = vadd.f32 %v1335, %v1477
        %v1479 = vpop.f32.mrb[0].mxu0
        %v1480 = vadd.f32 %v1337, %v1479
        %1481 = vmatprep.mubr.f32.mxu0 %v1221
        %1482 = vmatmul.mubr.f32.gmra.mrb[0].mxu0 %v1220
        %v1483 = vpop.f32.mrb[0].mxu0
        %v1484 = vadd.f32 %v1341, %v1483
        %v1485 = vpop.f32.mrb[0].mxu0
        %v1486 = vadd.f32 %v1343, %v1485
        %1487 = vmatprep.mubr.f32.mxu0 %v1225
        %1488 = vmatmul.mubr.f32.gmra.mrb[0].mxu0 %v1224
        %v1489 = vpop.f32.mrb[0].mxu0
        %v1490 = vadd.f32 %v1347, %v1489
        %v1491 = vpop.f32.mrb[0].mxu0
        %v1492 = vadd.f32 %v1349, %v1491
        %1493 = vmatprep.mubr.f32.mxu0 %v1229
        %1494 = vmatmul.mubr.f32.gmra.mrb[0].mxu0 %v1228
        %v1495 = vpop.f32.mrb[0].mxu0
        %v1496 = vadd.f32 %v1353, %v1495
        %v1497 = vpop.f32.mrb[0].mxu0
        %v1498 = vadd.f32 %v1355, %v1497
        %1499 = vmatprep.mubr.f32.mxu0 %v1233
        %1500 = vmatmul.mubr.f32.gmra.mrb[0].mxu0 %v1232
        %v1501 = vpop.f32.mrb[0].mxu0
        %v1502 = vadd.f32 %v1359, %v1501
        %v1503 = vpop.f32.mrb[0].mxu0
        %v1504 = vadd.f32 %v1361, %v1503
        %1505 = vmatprep.mubr.f32.mxu0 %v1237
        %1506 = vmatmul.mubr.f32.gmra.mrb[0].mxu0 %v1236
        %v1507 = vpop.f32.mrb[0].mxu0
        %v1508 = vadd.f32 %v1365, %v1507
        %v1509 = vpop.f32.mrb[0].mxu0
        %v1510 = vadd.f32 %v1367, %v1509
        %1511 = vmatprep.mubr.f32.mxu0 %v1241
        %1512 = vmatmul.mubr.f32.gmra.mrb[0].mxu0 %v1240
        %v1513 = vpop.f32.mrb[0].mxu0
        %v1514 = vadd.f32 %v1371, %v1513
        %v1515 = vpop.f32.mrb[0].mxu0
        %v1516 = vadd.f32 %v1373, %v1515
        %1517 = vmatprep.mubr.f32.mxu0 %v1245
        %1518 = vmatmul.mubr.f32.gmra.mrb[0].mxu0 %v1244
        %v1519 = vpop.f32.mrb[0].mxu0
        %v1520 = vadd.f32 %v1377, %v1519
        %v1521 = vpop.f32.mrb[0].mxu0
        %v1522 = vadd.f32 %v1379, %v1521
        %1523 = vmatprep.mubr.f32.mxu0 %v1249
        %1524 = vmatmul.mubr.f32.gmra.mrb[0].mxu0 %v1248
        %v1525 = vpop.f32.mrb[0].mxu0
        %v1526 = vadd.f32 %v1383, %v1525
        %v1527 = vpop.f32.mrb[0].mxu0
        %v1528 = vadd.f32 %v1385, %v1527
        %1529 = vmatprep.mubr.f32.mxu0 %v1253
        %1530 = vmatmul.mubr.f32.gmra.mrb[0].mxu0 %v1252
        %v1531 = vpop.f32.mrb[0].mxu0
        %v1532 = vadd.f32 %v1389, %v1531
        %v1533 = vpop.f32.mrb[0].mxu0
        %v1534 = vadd.f32 %v1391, %v1533
        %1535 = vmatprep.mubr.f32.mxu0 %v1257
        %1536 = vmatmul.mubr.f32.gmra.mrb[0].mxu0 %v1256
        %v1537 = vpop.f32.mrb[0].mxu0
        %v1538 = vadd.f32 %v1395, %v1537
        %v1539 = vpop.f32.mrb[0].mxu0
        %v1540 = vadd.f32 %v1397, %v1539
        %1541 = vmatprep.mubr.f32.mxu0 %v1261
        %1542 = vmatmul.mubr.f32.gmra.mrb[0].mxu0 %v1260
        %v1543 = vpop.f32.mrb[0].mxu0
        %v1544 = vadd.f32 %v1401, %v1543
        %v1545 = vpop.f32.mrb[0].mxu0
        %v1546 = vadd.f32 %v1403, %v1545
        %1547 = vdwg.mxu0
        %1548 = vmatprep.subr.mxu0 %v477
        %1549 = vmatpush1.msra.mxu0 %v476
        %1550 = vmatprep.subr.mxu0 %v481
        %1551 = vmatpush1.msra.mxu0 %v480
        %1552 = vmatprep.subr.mxu0 %v485
        %1553 = vmatpush1.msra.mxu0 %v484
        %1554 = vmatprep.subr.mxu0 %v489
        %1555 = vmatpush1.msra.mxu0 %v488
        %1556 = vmatprep.subr.mxu0 %v493
        %1557 = vmatpush1.msra.mxu0 %v492
        %1558 = vmatprep.subr.mxu0 %v497
        %1559 = vmatpush1.msra.mxu0 %v496
        %1560 = vmatprep.subr.mxu0 %v501
        %1561 = vmatpush1.msra.mxu0 %v500
        %1562 = vmatprep.subr.mxu0 %v505
        %1563 = vmatpush1.msra.mxu0 %v504
        %1564 = vmatprep.subr.mxu0 %v509
        %1565 = vmatpush1.msra.mxu0 %v508
        %1566 = vmatprep.subr.mxu0 %v513
        %1567 = vmatpush1.msra.mxu0 %v512
        %1568 = vmatprep.subr.mxu0 %v517
        %1569 = vmatpush1.msra.mxu0 %v516
        %1570 = vmatprep.subr.mxu0 %v521
        %1571 = vmatpush1.msra.mxu0 %v520
        %1572 = vmatprep.subr.mxu0 %v525
        %1573 = vmatpush1.msra.mxu0 %v524
        %1574 = vmatprep.subr.mxu0 %v529
        %1575 = vmatpush1.msra.mxu0 %v528
        %1576 = vmatprep.subr.mxu0 %v533
        %1577 = vmatpush1.msra.mxu0 %v532
        %1578 = vmatprep.subr.mxu0 %v537
        %1579 = vmatpush1.msra.mxu0 %v536
        %1580 = vmatprep.subr.mxu0 %v701
        %1581 = vmatpush1.msra.mxu0 %v700
        %1582 = vmatprep.subr.mxu0 %v705
        %1583 = vmatpush1.msra.mxu0 %v704
        %1584 = vmatprep.subr.mxu0 %v709
        %1585 = vmatpush1.msra.mxu0 %v708
        %1586 = vmatprep.subr.mxu0 %v713
        %1587 = vmatpush1.msra.mxu0 %v712
        %1588 = vmatprep.subr.mxu0 %v717
        %1589 = vmatpush1.msra.mxu0 %v716
        %1590 = vmatprep.subr.mxu0 %v721
        %1591 = vmatpush1.msra.mxu0 %v720
        %1592 = vmatprep.subr.mxu0 %v725
        %1593 = vmatpush1.msra.mxu0 %v724
        %1594 = vmatprep.subr.mxu0 %v729
        %1595 = vmatpush1.msra.mxu0 %v728
        %1596 = vmatprep.subr.mxu0 %v733
        %1597 = vmatpush1.msra.mxu0 %v732
        %1598 = vmatprep.subr.mxu0 %v737
        %1599 = vmatpush1.msra.mxu0 %v736
        %1600 = vmatprep.subr.mxu0 %v741
        %1601 = vmatpush1.msra.mxu0 %v740
        %1602 = vmatprep.subr.mxu0 %v745
        %1603 = vmatpush1.msra.mxu0 %v744
        %1604 = vmatprep.subr.mxu0 %v749
        %1605 = vmatpush1.msra.mxu0 %v748
        %1606 = vmatprep.subr.mxu0 %v753
        %1607 = vmatpush1.msra.mxu0 %v752
        %1608 = vmatprep.subr.mxu0 %v757
        %1609 = vmatpush1.msra.mxu0 %v756
        %1610 = vmatprep.subr.mxu0 %v761
        %1611 = vmatpush1.msra.mxu0 %v760
        %1612 = vmatprep.mubr.f32.mxu0 %v1211
        %1613 = vmatmul.mubr.f32.gmra.mrb[0].mxu0 %v1210
        %v1614 = vpop.f32.mrb[0].mxu0
        %v1615 = vadd.f32 0.0, %v1614
        %v1616 = vpop.f32.mrb[0].mxu0
        %v1617 = vadd.f32 0.0, %v1616
        %1618 = vmatprep.mubr.f32.mxu0 %v1215
        %1619 = vmatmul.mubr.f32.gmra.mrb[0].mxu0 %v1214
        %v1620 = vpop.f32.mrb[0].mxu0
        %v1621 = vadd.f32 0.0, %v1620
        %v1622 = vpop.f32.mrb[0].mxu0
        %v1623 = vadd.f32 0.0, %v1622
        %1624 = vmatprep.mubr.f32.mxu0 %v1219
        %1625 = vmatmul.mubr.f32.gmra.mrb[0].mxu0 %v1218
        %v1626 = vpop.f32.mrb[0].mxu0
        %v1627 = vadd.f32 0.0, %v1626
        %v1628 = vpop.f32.mrb[0].mxu0
        %v1629 = vadd.f32 0.0, %v1628
        %1630 = vmatprep.mubr.f32.mxu0 %v1223
        %1631 = vmatmul.mubr.f32.gmra.mrb[0].mxu0 %v1222
        %v1632 = vpop.f32.mrb[0].mxu0
        %v1633 = vadd.f32 0.0, %v1632
        %v1634 = vpop.f32.mrb[0].mxu0
        %v1635 = vadd.f32 0.0, %v1634
        %1636 = vmatprep.mubr.f32.mxu0 %v1227
        %1637 = vmatmul.mubr.f32.gmra.mrb[0].mxu0 %v1226
        %v1638 = vpop.f32.mrb[0].mxu0
        %v1639 = vadd.f32 0.0, %v1638
        %v1640 = vpop.f32.mrb[0].mxu0
        %v1641 = vadd.f32 0.0, %v1640
        %1642 = vmatprep.mubr.f32.mxu0 %v1231
        %1643 = vmatmul.mubr.f32.gmra.mrb[0].mxu0 %v1230
        %v1644 = vpop.f32.mrb[0].mxu0
        %v1645 = vadd.f32 0.0, %v1644
        %v1646 = vpop.f32.mrb[0].mxu0
        %v1647 = vadd.f32 0.0, %v1646
        %1648 = vmatprep.mubr.f32.mxu0 %v1235
        %1649 = vmatmul.mubr.f32.gmra.mrb[0].mxu0 %v1234
        %v1650 = vpop.f32.mrb[0].mxu0
        %v1651 = vadd.f32 0.0, %v1650
        %v1652 = vpop.f32.mrb[0].mxu0
        %v1653 = vadd.f32 0.0, %v1652
        %1654 = vmatprep.mubr.f32.mxu0 %v1239
        %1655 = vmatmul.mubr.f32.gmra.mrb[0].mxu0 %v1238
        %v1656 = vpop.f32.mrb[0].mxu0
        %v1657 = vadd.f32 0.0, %v1656
        %v1658 = vpop.f32.mrb[0].mxu0
        %v1659 = vadd.f32 0.0, %v1658
        %1660 = vmatprep.mubr.f32.mxu0 %v1243
        %1661 = vmatmul.mubr.f32.gmra.mrb[0].mxu0 %v1242
        %v1662 = vpop.f32.mrb[0].mxu0
        %v1663 = vadd.f32 0.0, %v1662
        %v1664 = vpop.f32.mrb[0].mxu0
        %v1665 = vadd.f32 0.0, %v1664
        %1666 = vmatprep.mubr.f32.mxu0 %v1247
        %1667 = vmatmul.mubr.f32.gmra.mrb[0].mxu0 %v1246
        %v1668 = vpop.f32.mrb[0].mxu0
        %v1669 = vadd.f32 0.0, %v1668
        %v1670 = vpop.f32.mrb[0].mxu0
        %v1671 = vadd.f32 0.0, %v1670
        %1672 = vmatprep.mubr.f32.mxu0 %v1251
        %1673 = vmatmul.mubr.f32.gmra.mrb[0].mxu0 %v1250
        %v1674 = vpop.f32.mrb[0].mxu0
        %v1675 = vadd.f32 0.0, %v1674
        %v1676 = vpop.f32.mrb[0].mxu0
        %v1677 = vadd.f32 0.0, %v1676
        %1678 = vmatprep.mubr.f32.mxu0 %v1255
        %1679 = vmatmul.mubr.f32.gmra.mrb[0].mxu0 %v1254
        %v1680 = vpop.f32.mrb[0].mxu0
        %v1681 = vadd.f32 0.0, %v1680
        %v1682 = vpop.f32.mrb[0].mxu0
        %v1683 = vadd.f32 0.0, %v1682
        %1684 = vmatprep.mubr.f32.mxu0 %v1259
        %1685 = vmatmul.mubr.f32.gmra.mrb[0].mxu0 %v1258
        %v1686 = vpop.f32.mrb[0].mxu0
        %v1687 = vadd.f32 0.0, %v1686
        %v1688 = vpop.f32.mrb[0].mxu0
        %v1689 = vadd.f32 0.0, %v1688
        %1690 = vdwg.mxu0
        %1691 = vmatprep.subr.mxu0 %v925
        %1692 = vmatpush1.msra.mxu0 %v924
        %1693 = vmatprep.subr.mxu0 %v929
        %1694 = vmatpush1.msra.mxu0 %v928
        %1695 = vmatprep.subr.mxu0 %v933
        %1696 = vmatpush1.msra.mxu0 %v932
        %1697 = vmatprep.subr.mxu0 %v937
        %1698 = vmatpush1.msra.mxu0 %v936
        %1699 = vmatprep.subr.mxu0 %v941
        %1700 = vmatpush1.msra.mxu0 %v940
        %1701 = vmatprep.subr.mxu0 %v945
        %1702 = vmatpush1.msra.mxu0 %v944
        %1703 = vmatprep.subr.mxu0 %v949
        %1704 = vmatpush1.msra.mxu0 %v948
        %1705 = vmatprep.subr.mxu0 %v953
        %1706 = vmatpush1.msra.mxu0 %v952
        %1707 = vmatprep.subr.mxu0 %v957
        %1708 = vmatpush1.msra.mxu0 %v956
        %1709 = vmatprep.subr.mxu0 %v961
        %1710 = vmatpush1.msra.mxu0 %v960
        %1711 = vmatprep.subr.mxu0 %v965
        %1712 = vmatpush1.msra.mxu0 %v964
        %1713 = vmatprep.subr.mxu0 %v969
        %1714 = vmatpush1.msra.mxu0 %v968
        %1715 = vmatprep.subr.mxu0 %v973
        %1716 = vmatpush1.msra.mxu0 %v972
        %1717 = vmatprep.subr.mxu0 %v977
        %1718 = vmatpush1.msra.mxu0 %v976
        %1719 = vmatprep.subr.mxu0 %v981
        %1720 = vmatpush1.msra.mxu0 %v980
        %1721 = vmatprep.subr.mxu0 %v985
        %1722 = vmatpush1.msra.mxu0 %v984
        %1723 = vmatprep.subr.mxu0 %v1149
        %1724 = vmatpush1.msra.mxu0 %v1148
        %1725 = vmatprep.subr.mxu0 %v1153
        %1726 = vmatpush1.msra.mxu0 %v1152
        %1727 = vmatprep.subr.mxu0 %v1157
        %1728 = vmatpush1.msra.mxu0 %v1156
        %1729 = vmatprep.subr.mxu0 %v1161
        %1730 = vmatpush1.msra.mxu0 %v1160
        %1731 = vmatprep.subr.mxu0 %v1165
        %1732 = vmatpush1.msra.mxu0 %v1164
        %1733 = vmatprep.subr.mxu0 %v1169
        %1734 = vmatpush1.msra.mxu0 %v1168
        %1735 = vmatprep.subr.mxu0 %v1173
        %1736 = vmatpush1.msra.mxu0 %v1172
        %1737 = vmatprep.subr.mxu0 %v1177
        %1738 = vmatpush1.msra.mxu0 %v1176
        %1739 = vmatprep.subr.mxu0 %v1181
        %1740 = vmatpush1.msra.mxu0 %v1180
        %1741 = vmatprep.subr.mxu0 %v1185
        %1742 = vmatpush1.msra.mxu0 %v1184
        %1743 = vmatprep.subr.mxu0 %v1189
        %1744 = vmatpush1.msra.mxu0 %v1188
        %1745 = vmatprep.subr.mxu0 %v1193
        %1746 = vmatpush1.msra.mxu0 %v1192
        %1747 = vmatprep.subr.mxu0 %v1197
        %1748 = vmatpush1.msra.mxu0 %v1196
        %1749 = vmatprep.subr.mxu0 %v1201
        %1750 = vmatpush1.msra.mxu0 %v1200
        %1751 = vmatprep.subr.mxu0 %v1205
        %1752 = vmatpush1.msra.mxu0 %v1204
        %1753 = vmatprep.subr.mxu0 %v1209
        %1754 = vmatpush1.msra.mxu0 %v1208
        %1755 = vmatprep.mubr.f32.mxu0 %v1213
        %1756 = vmatmul.mubr.f32.gmra.mrb[0].mxu0 %v1212
        %v1757 = vpop.f32.mrb[0].mxu0
        %v1758 = vadd.f32 %v1615, %v1757
        %v1759 = vpop.f32.mrb[0].mxu0
        %v1760 = vadd.f32 %v1617, %v1759
        %1761 = vmatprep.mubr.f32.mxu0 %v1217
        %1762 = vmatmul.mubr.f32.gmra.mrb[0].mxu0 %v1216
        %v1763 = vpop.f32.mrb[0].mxu0
        %v1764 = vadd.f32 %v1621, %v1763
        %v1765 = vpop.f32.mrb[0].mxu0
        %v1766 = vadd.f32 %v1623, %v1765
        %1767 = vmatprep.mubr.f32.mxu0 %v1221
        %1768 = vmatmul.mubr.f32.gmra.mrb[0].mxu0 %v1220
        %v1769 = vpop.f32.mrb[0].mxu0
        %v1770 = vadd.f32 %v1627, %v1769
        %v1771 = vpop.f32.mrb[0].mxu0
        %v1772 = vadd.f32 %v1629, %v1771
        %1773 = vmatprep.mubr.f32.mxu0 %v1225
        %1774 = vmatmul.mubr.f32.gmra.mrb[0].mxu0 %v1224
        %v1775 = vpop.f32.mrb[0].mxu0
        %v1776 = vadd.f32 %v1633, %v1775
        %v1777 = vpop.f32.mrb[0].mxu0
        %v1778 = vadd.f32 %v1635, %v1777
        %1779 = vmatprep.mubr.f32.mxu0 %v1229
        %1780 = vmatmul.mubr.f32.gmra.mrb[0].mxu0 %v1228
        %v1781 = vpop.f32.mrb[0].mxu0
        %v1782 = vadd.f32 %v1639, %v1781
        %v1783 = vpop.f32.mrb[0].mxu0
        %v1784 = vadd.f32 %v1641, %v1783
        %1785 = vmatprep.mubr.f32.mxu0 %v1233
        %1786 = vmatmul.mubr.f32.gmra.mrb[0].mxu0 %v1232
        %v1787 = vpop.f32.mrb[0].mxu0
        %v1788 = vadd.f32 %v1645, %v1787
        %v1789 = vpop.f32.mrb[0].mxu0
        %v1790 = vadd.f32 %v1647, %v1789
        %1791 = vmatprep.mubr.f32.mxu0 %v1237
        %1792 = vmatmul.mubr.f32.gmra.mrb[0].mxu0 %v1236
        %v1793 = vpop.f32.mrb[0].mxu0
        %v1794 = vadd.f32 %v1651, %v1793
        %v1795 = vpop.f32.mrb[0].mxu0
        %v1796 = vadd.f32 %v1653, %v1795
        %1797 = vmatprep.mubr.f32.mxu0 %v1241
        %1798 = vmatmul.mubr.f32.gmra.mrb[0].mxu0 %v1240
        %v1799 = vpop.f32.mrb[0].mxu0
        %v1800 = vadd.f32 %v1657, %v1799
        %v1801 = vpop.f32.mrb[0].mxu0
        %v1802 = vadd.f32 %v1659, %v1801
        %1803 = vmatprep.mubr.f32.mxu0 %v1245
        %1804 = vmatmul.mubr.f32.gmra.mrb[0].mxu0 %v1244
        %v1805 = vpop.f32.mrb[0].mxu0
        %v1806 = vadd.f32 %v1663, %v1805
        %v1807 = vpop.f32.mrb[0].mxu0
        %v1808 = vadd.f32 %v1665, %v1807
        %1809 = vmatprep.mubr.f32.mxu0 %v1249
        %1810 = vmatmul.mubr.f32.gmra.mrb[0].mxu0 %v1248
        %v1811 = vpop.f32.mrb[0].mxu0
        %v1812 = vadd.f32 %v1669, %v1811
        %v1813 = vpop.f32.mrb[0].mxu0
        %v1814 = vadd.f32 %v1671, %v1813
        %1815 = vmatprep.mubr.f32.mxu0 %v1253
        %1816 = vmatmul.mubr.f32.gmra.mrb[0].mxu0 %v1252
        %v1817 = vpop.f32.mrb[0].mxu0
        %v1818 = vadd.f32 %v1675, %v1817
        %v1819 = vpop.f32.mrb[0].mxu0
        %v1820 = vadd.f32 %v1677, %v1819
        %1821 = vmatprep.mubr.f32.mxu0 %v1257
        %1822 = vmatmul.mubr.f32.gmra.mrb[0].mxu0 %v1256
        %v1823 = vpop.f32.mrb[0].mxu0
        %v1824 = vadd.f32 %v1681, %v1823
        %v1825 = vpop.f32.mrb[0].mxu0
        %v1826 = vadd.f32 %v1683, %v1825
        %1827 = vmatprep.mubr.f32.mxu0 %v1261
        %1828 = vmatmul.mubr.f32.gmra.mrb[0].mxu0 %v1260
        %v1829 = vpop.f32.mrb[0].mxu0
        %v1830 = vadd.f32 %v1687, %v1829
        %v1831 = vpop.f32.mrb[0].mxu0
        %v1832 = vadd.f32 %v1689, %v1831
        %1833 = vdwg.mxu0
        %v1834 = vmul.f32 %v1472, %v1472
        %v1835 = vmul.f32 %v1474, %v1474
        %v1836 = vmul.f32 %v1758, %v1758
        %v1837 = vmul.f32 %v1760, %v1760
        %v1838 = vmul.f32 %v1478, %v1478
        %v1839 = vmul.f32 %v1480, %v1480
        %v1840 = vmul.f32 %v1764, %v1764
        %v1841 = vmul.f32 %v1766, %v1766
        %v1842 = vmul.f32 %v1484, %v1484
        %v1843 = vmul.f32 %v1486, %v1486
        %v1844 = vmul.f32 %v1770, %v1770
        %v1845 = vmul.f32 %v1772, %v1772
        %v1846 = vmul.f32 %v1490, %v1490
        %v1847 = vmul.f32 %v1492, %v1492
        %v1848 = vmul.f32 %v1776, %v1776
        %v1849 = vmul.f32 %v1778, %v1778
        %v1850 = vadd.f32 %v1834, %v1838
        %v1851 = vadd.f32 %v1850, %v1842
        %v1852 = vadd.f32 %v1851, %v1846
        %v1853 = vrot.slane %v1852, 4
        %v1854 = vadd.f32 %v1852, %v1853
        %v1855 = vrot.slane %v1854, 2
        %v1856 = vadd.f32 %v1854, %v1855
        %v1857 = vrot.slane %v1856, 1
        %v1858 = vadd.f32 %v1856, %v1857
        %v1859 = vadd.f32 %v1835, %v1839
        %v1860 = vadd.f32 %v1859, %v1843
        %v1861 = vadd.f32 %v1860, %v1847
        %v1862 = vrot.slane %v1861, 4
        %v1863 = vadd.f32 %v1861, %v1862
        %v1864 = vrot.slane %v1863, 2
        %v1865 = vadd.f32 %v1863, %v1864
        %v1866 = vrot.slane %v1865, 1
        %v1867 = vadd.f32 %v1865, %v1866
        %v1868 = vadd.f32 %v1836, %v1840
        %v1869 = vadd.f32 %v1868, %v1844
        %v1870 = vadd.f32 %v1869, %v1848
        %v1871 = vrot.slane %v1870, 4
        %v1872 = vadd.f32 %v1870, %v1871
        %v1873 = vrot.slane %v1872, 2
        %v1874 = vadd.f32 %v1872, %v1873
        %v1875 = vrot.slane %v1874, 1
        %v1876 = vadd.f32 %v1874, %v1875
        %v1877 = vadd.f32 %v1837, %v1841
        %v1878 = vadd.f32 %v1877, %v1845
        %v1879 = vadd.f32 %v1878, %v1849
        %v1880 = vrot.slane %v1879, 4
        %v1881 = vadd.f32 %v1879, %v1880
        %v1882 = vrot.slane %v1881, 2
        %v1883 = vadd.f32 %v1881, %v1882
        %v1884 = vrot.slane %v1883, 1
        %v1885 = vadd.f32 %v1883, %v1884
        %v1886 = vld [vmem:[%s3] sm:$0xff]
        %v1887 = vld [vmem:[%s3 + $0x8] sm:$0xff]
        %v1888 = vld [vmem:[%s3 + $0x10] sm:$0xff]
        %v1889 = vld [vmem:[%s3 + $0x18] sm:$0xff]
        %v1890 = vld [vmem:[%s3 + $0x20] sm:$0xff]
        %v1891 = vld [vmem:[%s3 + $0x28] sm:$0xff]
        %v1892 = vld [vmem:[%s3 + $0x30] sm:$0xff]
        %v1893 = vld [vmem:[%s3 + $0x38] sm:$0xff]
        %1895 = vset.pattern.permute.xlu0 0
        %1896 = vperm.xlu0 %1895, %v1886
        %v1897 = vpop.permute.xlu0 %1896
        %1900 = vset.pattern.permute.xlu0 0
        %1901 = vperm.xlu0 %1900, %v1887
        %v1902 = vpop.permute.xlu0 %1901
        %1905 = vset.pattern.permute.xlu0 0
        %1906 = vperm.xlu0 %1905, %v1888
        %v1907 = vpop.permute.xlu0 %1906
        %1910 = vset.pattern.permute.xlu0 0
        %1911 = vperm.xlu0 %1910, %v1889
        %v1912 = vpop.permute.xlu0 %1911
        %1915 = vset.pattern.permute.xlu0 0
        %1916 = vperm.xlu0 %1915, %v1890
        %v1917 = vpop.permute.xlu0 %1916
        %1920 = vset.pattern.permute.xlu0 0
        %1921 = vperm.xlu0 %1920, %v1891
        %v1922 = vpop.permute.xlu0 %1921
        %1925 = vset.pattern.permute.xlu0 0
        %1926 = vperm.xlu0 %1925, %v1892
        %v1927 = vpop.permute.xlu0 %1926
        %1930 = vset.pattern.permute.xlu0 0
        %1931 = vperm.xlu0 %1930, %v1893
        %v1932 = vpop.permute.xlu0 %1931
        %v1934 = vadd.f32 %v1502, %v1897
        %v1935 = vadd.f32 %v1504, %v1897
        %v1936 = vadd.f32 %v1788, %v1897
        %v1937 = vadd.f32 %v1790, %v1897
        %v1938 = vadd.f32 %v1508, %v1902
        %v1939 = vadd.f32 %v1510, %v1902
        %v1940 = vadd.f32 %v1794, %v1902
        %v1941 = vadd.f32 %v1796, %v1902
        %v1942 = vadd.f32 %v1514, %v1907
        %v1943 = vadd.f32 %v1516, %v1907
        %v1944 = vadd.f32 %v1800, %v1907
        %v1945 = vadd.f32 %v1802, %v1907
        %v1946 = vadd.f32 %v1520, %v1912
        %v1947 = vadd.f32 %v1522, %v1912
        %v1948 = vadd.f32 %v1806, %v1912
        %v1949 = vadd.f32 %v1808, %v1912
        %v1950 = vadd.f32 %v1526, %v1917
        %v1951 = vadd.f32 %v1528, %v1917
        %v1952 = vadd.f32 %v1812, %v1917
        %v1953 = vadd.f32 %v1814, %v1917
        %v1954 = vadd.f32 %v1532, %v1922
        %v1955 = vadd.f32 %v1534, %v1922
        %v1956 = vadd.f32 %v1818, %v1922
        %v1957 = vadd.f32 %v1820, %v1922
        %v1958 = vadd.f32 %v1538, %v1927
        %v1959 = vadd.f32 %v1540, %v1927
        %v1960 = vadd.f32 %v1824, %v1927
        %v1961 = vadd.f32 %v1826, %v1927
        %v1962 = vadd.f32 %v1544, %v1932
        %v1963 = vadd.f32 %v1546, %v1932
        %v1964 = vadd.f32 %v1830, %v1932
        %v1965 = vadd.f32 %v1832, %v1932
        %v1966 = vmax.f32 %v1934, 0.0
        %v1967 = vmax.f32 %v1935, 0.0
        %v1968 = vmax.f32 %v1936, 0.0
        %v1969 = vmax.f32 %v1937, 0.0
        %v1970 = vmax.f32 %v1938, 0.0
        %v1971 = vmax.f32 %v1939, 0.0
        %v1972 = vmax.f32 %v1940, 0.0
        %v1973 = vmax.f32 %v1941, 0.0
        %v1974 = vmax.f32 %v1942, 0.0
        %v1975 = vmax.f32 %v1943, 0.0
        %v1976 = vmax.f32 %v1944, 0.0
        %v1977 = vmax.f32 %v1945, 0.0
        %v1978 = vmax.f32 %v1946, 0.0
        %v1979 = vmax.f32 %v1947, 0.0
        %v1980 = vmax.f32 %v1948, 0.0
        %v1981 = vmax.f32 %v1949, 0.0
        %v1982 = vmax.f32 %v1950, 0.0
        %v1983 = vmax.f32 %v1951, 0.0
        %v1984 = vmax.f32 %v1952, 0.0
        %v1985 = vmax.f32 %v1953, 0.0
        %v1986 = vmax.f32 %v1954, 0.0
        %v1987 = vmax.f32 %v1955, 0.0
        %v1988 = vmax.f32 %v1956, 0.0
        %v1989 = vmax.f32 %v1957, 0.0
        %v1990 = vmax.f32 %v1958, 0.0
        %v1991 = vmax.f32 %v1959, 0.0
        %v1992 = vmax.f32 %v1960, 0.0
        %v1993 = vmax.f32 %v1961, 0.0
        %v1994 = vmax.f32 %v1962, 0.0
        %v1995 = vmax.f32 %v1963, 0.0
        %v1996 = vmax.f32 %v1964, 0.0
        %v1997 = vmax.f32 %v1965, 0.0
        %v1998 = vld [vmem:[%s4] sm:$0xff]
        %v1999 = vld [vmem:[%s4 + $0x8] sm:$0xff]
        %v2000 = vld [vmem:[%s4 + $0x10] sm:$0xff]
        %v2001 = vld [vmem:[%s4 + $0x18] sm:$0xff]
        %v2002 = vld [vmem:[%s5] sm:$0xff]
        %v2003 = vld [vmem:[%s5 + $0x8] sm:$0xff]
        %v2004 = vld [vmem:[%s5 + $0x10] sm:$0xff]
        %v2005 = vld [vmem:[%s5 + $0x18] sm:$0xff]
        %2007 = vset.pattern.permute.xlu0 0
        %2008 = vperm.xlu0 %2007, %v2002
        %v2009 = vpop.permute.xlu0 %2008
        %2012 = vset.pattern.permute.xlu0 0
        %2013 = vperm.xlu0 %2012, %v2003
        %v2014 = vpop.permute.xlu0 %2013
        %2017 = vset.pattern.permute.xlu0 0
        %2018 = vperm.xlu0 %2017, %v2004
        %v2019 = vpop.permute.xlu0 %2018
        %2022 = vset.pattern.permute.xlu0 0
        %2023 = vperm.xlu0 %2022, %v2005
        %v2024 = vpop.permute.xlu0 %2023
        %vm2026 = vcmask 523264
        %v2028 = vsel %vm2026, %v1998, 0
        %v2031 = vsel %vm2026, %v1999, 0
        %v2034 = vsel %vm2026, %v2000, 0
        %v2037 = vsel %vm2026, %v2001, 0
        %2039 = vmatprep.subr.mxu0 %v1967
        %2040 = vmatpush1.msra.mxu0 %v1966
        %2041 = vmatprep.subr.mxu0 %v1971
        %2042 = vmatpush1.msra.mxu0 %v1970
        %2043 = vmatprep.subr.mxu0 %v1975
        %2044 = vmatpush1.msra.mxu0 %v1974
        %2045 = vmatprep.subr.mxu0 %v1979
        %2046 = vmatpush1.msra.mxu0 %v1978
        %2047 = vmatprep.subr.mxu0 %v1983
        %2048 = vmatpush1.msra.mxu0 %v1982
        %2049 = vmatprep.subr.mxu0 %v1987
        %2050 = vmatpush1.msra.mxu0 %v1986
        %2051 = vmatprep.subr.mxu0 %v1991
        %2052 = vmatpush1.msra.mxu0 %v1990
        %2053 = vmatprep.subr.mxu0 %v1995
        %2054 = vmatpush1.msra.mxu0 %v1994
        %2055 = vmatprep.subr.mxu0 0.0
        %2056 = vmatpush1.msra.mxu0 0.0
        %2057 = vmatprep.subr.mxu0 0.0
        %2058 = vmatpush1.msra.mxu0 0.0
        %2059 = vmatprep.subr.mxu0 0.0
        %2060 = vmatpush1.msra.mxu0 0.0
        %2061 = vmatprep.subr.mxu0 0.0
        %2062 = vmatpush1.msra.mxu0 0.0
        %2063 = vmatprep.subr.mxu0 0.0
        %2064 = vmatpush1.msra.mxu0 0.0
        %2065 = vmatprep.subr.mxu0 0.0
        %2066 = vmatpush1.msra.mxu0 0.0
        %2067 = vmatprep.subr.mxu0 0.0
        %2068 = vmatpush1.msra.mxu0 0.0
        %2069 = vmatprep.subr.mxu0 0.0
        %2070 = vmatpush1.msra.mxu0 0.0
        %2071 = vmatprep.subr.mxu0 0.0
        %2072 = vmatpush1.msra.mxu0 0.0
        %2073 = vmatprep.subr.mxu0 0.0
        %2074 = vmatpush1.msra.mxu0 0.0
        %2075 = vmatprep.subr.mxu0 0.0
        %2076 = vmatpush1.msra.mxu0 0.0
        %2077 = vmatprep.subr.mxu0 0.0
        %2078 = vmatpush1.msra.mxu0 0.0
        %2079 = vmatprep.subr.mxu0 0.0
        %2080 = vmatpush1.msra.mxu0 0.0
        %2081 = vmatprep.subr.mxu0 0.0
        %2082 = vmatpush1.msra.mxu0 0.0
        %2083 = vmatprep.subr.mxu0 0.0
        %2084 = vmatpush1.msra.mxu0 0.0
        %2085 = vmatprep.subr.mxu0 0.0
        %2086 = vmatpush1.msra.mxu0 0.0
        %2087 = vmatprep.subr.mxu0 0.0
        %2088 = vmatpush1.msra.mxu0 0.0
        %2089 = vmatprep.subr.mxu0 0.0
        %2090 = vmatpush1.msra.mxu0 0.0
        %2091 = vmatprep.subr.mxu0 0.0
        %2092 = vmatpush1.msra.mxu0 0.0
        %2093 = vmatprep.subr.mxu0 0.0
        %2094 = vmatpush1.msra.mxu0 0.0
        %2095 = vmatprep.subr.mxu0 0.0
        %2096 = vmatpush1.msra.mxu0 0.0
        %2097 = vmatprep.subr.mxu0 0.0
        %2098 = vmatpush1.msra.mxu0 0.0
        %2099 = vmatprep.subr.mxu0 0.0
        %2100 = vmatpush1.msra.mxu0 0.0
        %2101 = vmatprep.subr.mxu0 0.0
        %2102 = vmatpush1.msra.mxu0 0.0
        %2103 = vmatprep.mubr.f32.mxu0 0.0
        %2104 = vmatmul.mubr.f32.gmra.mrb[0].mxu0 %v2028
        %v2105 = vpop.f32.mrb[0].mxu0
        %v2106 = vadd.f32 %v2009, %v2105
        %v2107 = vpop.f32.mrb[0].mxu0
        %v2108 = vadd.f32 %v2009, %v2107
        %2109 = vmatprep.mubr.f32.mxu0 0.0
        %2110 = vmatmul.mubr.f32.gmra.mrb[0].mxu0 %v2031
        %v2111 = vpop.f32.mrb[0].mxu0
        %v2112 = vadd.f32 %v2014, %v2111
        %v2113 = vpop.f32.mrb[0].mxu0
        %v2114 = vadd.f32 %v2014, %v2113
        %2115 = vmatprep.mubr.f32.mxu0 0.0
        %2116 = vmatmul.mubr.f32.gmra.mrb[0].mxu0 %v2034
        %v2117 = vpop.f32.mrb[0].mxu0
        %v2118 = vadd.f32 %v2019, %v2117
        %v2119 = vpop.f32.mrb[0].mxu0
        %v2120 = vadd.f32 %v2019, %v2119
        %2121 = vmatprep.mubr.f32.mxu0 0.0
        %2122 = vmatmul.mubr.f32.gmra.mrb[0].mxu0 %v2037
        %v2123 = vpop.f32.mrb[0].mxu0
        %v2124 = vadd.f32 %v2024, %v2123
        %v2125 = vpop.f32.mrb[0].mxu0
        %v2126 = vadd.f32 %v2024, %v2125
        %2127 = vdwg.mxu0
        %2128 = vmatprep.subr.mxu0 %v1969
        %2129 = vmatpush1.msra.mxu0 %v1968
        %2130 = vmatprep.subr.mxu0 %v1973
        %2131 = vmatpush1.msra.mxu0 %v1972
        %2132 = vmatprep.subr.mxu0 %v1977
        %2133 = vmatpush1.msra.mxu0 %v1976
        %2134 = vmatprep.subr.mxu0 %v1981
        %2135 = vmatpush1.msra.mxu0 %v1980
        %2136 = vmatprep.subr.mxu0 %v1985
        %2137 = vmatpush1.msra.mxu0 %v1984
        %2138 = vmatprep.subr.mxu0 %v1989
        %2139 = vmatpush1.msra.mxu0 %v1988
        %2140 = vmatprep.subr.mxu0 %v1993
        %2141 = vmatpush1.msra.mxu0 %v1992
        %2142 = vmatprep.subr.mxu0 %v1997
        %2143 = vmatpush1.msra.mxu0 %v1996
        %2144 = vmatprep.subr.mxu0 0.0
        %2145 = vmatpush1.msra.mxu0 0.0
        %2146 = vmatprep.subr.mxu0 0.0
        %2147 = vmatpush1.msra.mxu0 0.0
        %2148 = vmatprep.subr.mxu0 0.0
        %2149 = vmatpush1.msra.mxu0 0.0
        %2150 = vmatprep.subr.mxu0 0.0
        %2151 = vmatpush1.msra.mxu0 0.0
        %2152 = vmatprep.subr.mxu0 0.0
        %2153 = vmatpush1.msra.mxu0 0.0
        %2154 = vmatprep.subr.mxu0 0.0
        %2155 = vmatpush1.msra.mxu0 0.0
        %2156 = vmatprep.subr.mxu0 0.0
        %2157 = vmatpush1.msra.mxu0 0.0
        %2158 = vmatprep.subr.mxu0 0.0
        %2159 = vmatpush1.msra.mxu0 0.0
        %2160 = vmatprep.subr.mxu0 0.0
        %2161 = vmatpush1.msra.mxu0 0.0
        %2162 = vmatprep.subr.mxu0 0.0
        %2163 = vmatpush1.msra.mxu0 0.0
        %2164 = vmatprep.subr.mxu0 0.0
        %2165 = vmatpush1.msra.mxu0 0.0
        %2166 = vmatprep.subr.mxu0 0.0
        %2167 = vmatpush1.msra.mxu0 0.0
        %2168 = vmatprep.subr.mxu0 0.0
        %2169 = vmatpush1.msra.mxu0 0.0
        %2170 = vmatprep.subr.mxu0 0.0
        %2171 = vmatpush1.msra.mxu0 0.0
        %2172 = vmatprep.subr.mxu0 0.0
        %2173 = vmatpush1.msra.mxu0 0.0
        %2174 = vmatprep.subr.mxu0 0.0
        %2175 = vmatpush1.msra.mxu0 0.0
        %2176 = vmatprep.subr.mxu0 0.0
        %2177 = vmatpush1.msra.mxu0 0.0
        %2178 = vmatprep.subr.mxu0 0.0
        %2179 = vmatpush1.msra.mxu0 0.0
        %2180 = vmatprep.subr.mxu0 0.0
        %2181 = vmatpush1.msra.mxu0 0.0
        %2182 = vmatprep.subr.mxu0 0.0
        %2183 = vmatpush1.msra.mxu0 0.0
        %2184 = vmatprep.subr.mxu0 0.0
        %2185 = vmatpush1.msra.mxu0 0.0
        %2186 = vmatprep.subr.mxu0 0.0
        %2187 = vmatpush1.msra.mxu0 0.0
        %2188 = vmatprep.subr.mxu0 0.0
        %2189 = vmatpush1.msra.mxu0 0.0
        %2190 = vmatprep.subr.mxu0 0.0
        %2191 = vmatpush1.msra.mxu0 0.0
        %2192 = vmatprep.mubr.f32.mxu0 0.0
        %2193 = vmatmul.mubr.f32.gmra.mrb[0].mxu0 %v2028
        %v2194 = vpop.f32.mrb[0].mxu0
        %v2195 = vadd.f32 %v2009, %v2194
        %v2196 = vpop.f32.mrb[0].mxu0
        %v2197 = vadd.f32 %v2009, %v2196
        %2198 = vmatprep.mubr.f32.mxu0 0.0
        %2199 = vmatmul.mubr.f32.gmra.mrb[0].mxu0 %v2031
        %v2200 = vpop.f32.mrb[0].mxu0
        %v2201 = vadd.f32 %v2014, %v2200
        %v2202 = vpop.f32.mrb[0].mxu0
        %v2203 = vadd.f32 %v2014, %v2202
        %2204 = vmatprep.mubr.f32.mxu0 0.0
        %2205 = vmatmul.mubr.f32.gmra.mrb[0].mxu0 %v2034
        %v2206 = vpop.f32.mrb[0].mxu0
        %v2207 = vadd.f32 %v2019, %v2206
        %v2208 = vpop.f32.mrb[0].mxu0
        %v2209 = vadd.f32 %v2019, %v2208
        %2210 = vmatprep.mubr.f32.mxu0 0.0
        %2211 = vmatmul.mubr.f32.gmra.mrb[0].mxu0 %v2037
        %v2212 = vpop.f32.mrb[0].mxu0
        %v2213 = vadd.f32 %v2024, %v2212
        %v2214 = vpop.f32.mrb[0].mxu0
        %v2215 = vadd.f32 %v2024, %v2214
        %2216 = vdwg.mxu0
        %v2217 = vmax.f32 %v2106, 0.0
        %v2218 = vmax.f32 %v2108, 0.0
        %v2219 = vmax.f32 %v2195, 0.0
        %v2220 = vmax.f32 %v2197, 0.0
        %v2221 = vmax.f32 %v2112, 0.0
        %v2222 = vmax.f32 %v2114, 0.0
        %v2223 = vmax.f32 %v2201, 0.0
        %v2224 = vmax.f32 %v2203, 0.0
        %v2225 = vmax.f32 %v2118, 0.0
        %v2226 = vmax.f32 %v2120, 0.0
        %v2227 = vmax.f32 %v2207, 0.0
        %v2228 = vmax.f32 %v2209, 0.0
        %v2229 = vmax.f32 %v2124, 0.0
        %v2230 = vmax.f32 %v2126, 0.0
        %v2231 = vmax.f32 %v2213, 0.0
        %v2232 = vmax.f32 %v2215, 0.0
        %v2233 = vld [vmem:[%s6] sm:$0x1]
        %vm2234 = vcmask 261120
        %v2236 = vsel %vm2234, %v2233, 0
        %2238 = vmatprep.subr.mxu0 %v2218
        %2239 = vmatpush1.msra.mxu0 %v2217
        %2240 = vmatprep.subr.mxu0 %v2222
        %2241 = vmatpush1.msra.mxu0 %v2221
        %2242 = vmatprep.subr.mxu0 %v2226
        %2243 = vmatpush1.msra.mxu0 %v2225
        %2244 = vmatprep.subr.mxu0 %v2230
        %2245 = vmatpush1.msra.mxu0 %v2229
        %2246 = vmatprep.subr.mxu0 0.0
        %2247 = vmatpush1.msra.mxu0 0.0
        %2248 = vmatprep.subr.mxu0 0.0
        %2249 = vmatpush1.msra.mxu0 0.0
        %2250 = vmatprep.subr.mxu0 0.0
        %2251 = vmatpush1.msra.mxu0 0.0
        %2252 = vmatprep.subr.mxu0 0.0
        %2253 = vmatpush1.msra.mxu0 0.0
        %2254 = vmatprep.subr.mxu0 0.0
        %2255 = vmatpush1.msra.mxu0 0.0
        %2256 = vmatprep.subr.mxu0 0.0
        %2257 = vmatpush1.msra.mxu0 0.0
        %2258 = vmatprep.subr.mxu0 0.0
        %2259 = vmatpush1.msra.mxu0 0.0
        %2260 = vmatprep.subr.mxu0 0.0
        %2261 = vmatpush1.msra.mxu0 0.0
        %2262 = vmatprep.subr.mxu0 0.0
        %2263 = vmatpush1.msra.mxu0 0.0
        %2264 = vmatprep.subr.mxu0 0.0
        %2265 = vmatpush1.msra.mxu0 0.0
        %2266 = vmatprep.subr.mxu0 0.0
        %2267 = vmatpush1.msra.mxu0 0.0
        %2268 = vmatprep.subr.mxu0 0.0
        %2269 = vmatpush1.msra.mxu0 0.0
        %2270 = vmatprep.subr.mxu0 0.0
        %2271 = vmatpush1.msra.mxu0 0.0
        %2272 = vmatprep.subr.mxu0 0.0
        %2273 = vmatpush1.msra.mxu0 0.0
        %2274 = vmatprep.subr.mxu0 0.0
        %2275 = vmatpush1.msra.mxu0 0.0
        %2276 = vmatprep.subr.mxu0 0.0
        %2277 = vmatpush1.msra.mxu0 0.0
        %2278 = vmatprep.subr.mxu0 0.0
        %2279 = vmatpush1.msra.mxu0 0.0
        %2280 = vmatprep.subr.mxu0 0.0
        %2281 = vmatpush1.msra.mxu0 0.0
        %2282 = vmatprep.subr.mxu0 0.0
        %2283 = vmatpush1.msra.mxu0 0.0
        %2284 = vmatprep.subr.mxu0 0.0
        %2285 = vmatpush1.msra.mxu0 0.0
        %2286 = vmatprep.subr.mxu0 0.0
        %2287 = vmatpush1.msra.mxu0 0.0
        %2288 = vmatprep.subr.mxu0 0.0
        %2289 = vmatpush1.msra.mxu0 0.0
        %2290 = vmatprep.subr.mxu0 0.0
        %2291 = vmatpush1.msra.mxu0 0.0
        %2292 = vmatprep.subr.mxu0 0.0
        %2293 = vmatpush1.msra.mxu0 0.0
        %2294 = vmatprep.subr.mxu0 0.0
        %2295 = vmatpush1.msra.mxu0 0.0
        %2296 = vmatprep.subr.mxu0 0.0
        %2297 = vmatpush1.msra.mxu0 0.0
        %2298 = vmatprep.subr.mxu0 0.0
        %2299 = vmatpush1.msra.mxu0 0.0
        %2300 = vmatprep.subr.mxu0 0.0
        %2301 = vmatpush1.msra.mxu0 0.0
        %2302 = vmatprep.mubr.f32.mxu0 0.0
        %2303 = vmatmul.mubr.f32.gmra.mrb[0].mxu0 %v2236
        %v2304 = vpop.f32.mrb[0].mxu0
        %v2305 = vadd.f32 0.0, %v2304
        %v2306 = vpop.f32.mrb[0].mxu0
        %v2307 = vadd.f32 0.0, %v2306
        %2308 = vdwg.mxu0
        %2309 = vmatprep.subr.mxu0 %v2220
        %2310 = vmatpush1.msra.mxu0 %v2219
        %2311 = vmatprep.subr.mxu0 %v2224
        %2312 = vmatpush1.msra.mxu0 %v2223
        %2313 = vmatprep.subr.mxu0 %v2228
        %2314 = vmatpush1.msra.mxu0 %v2227
        %2315 = vmatprep.subr.mxu0 %v2232
        %2316 = vmatpush1.msra.mxu0 %v2231
        %2317 = vmatprep.subr.mxu0 0.0
        %2318 = vmatpush1.msra.mxu0 0.0
        %2319 = vmatprep.subr.mxu0 0.0
        %2320 = vmatpush1.msra.mxu0 0.0
        %2321 = vmatprep.subr.mxu0 0.0
        %2322 = vmatpush1.msra.mxu0 0.0
        %2323 = vmatprep.subr.mxu0 0.0
        %2324 = vmatpush1.msra.mxu0 0.0
        %2325 = vmatprep.subr.mxu0 0.0
        %2326 = vmatpush1.msra.mxu0 0.0
        %2327 = vmatprep.subr.mxu0 0.0
        %2328 = vmatpush1.msra.mxu0 0.0
        %2329 = vmatprep.subr.mxu0 0.0
        %2330 = vmatpush1.msra.mxu0 0.0
        %2331 = vmatprep.subr.mxu0 0.0
        %2332 = vmatpush1.msra.mxu0 0.0
        %2333 = vmatprep.subr.mxu0 0.0
        %2334 = vmatpush1.msra.mxu0 0.0
        %2335 = vmatprep.subr.mxu0 0.0
        %2336 = vmatpush1.msra.mxu0 0.0
        %2337 = vmatprep.subr.mxu0 0.0
        %2338 = vmatpush1.msra.mxu0 0.0
        %2339 = vmatprep.subr.mxu0 0.0
        %2340 = vmatpush1.msra.mxu0 0.0
        %2341 = vmatprep.subr.mxu0 0.0
        %2342 = vmatpush1.msra.mxu0 0.0
        %2343 = vmatprep.subr.mxu0 0.0
        %2344 = vmatpush1.msra.mxu0 0.0
        %2345 = vmatprep.subr.mxu0 0.0
        %2346 = vmatpush1.msra.mxu0 0.0
        %2347 = vmatprep.subr.mxu0 0.0
        %2348 = vmatpush1.msra.mxu0 0.0
        %2349 = vmatprep.subr.mxu0 0.0
        %2350 = vmatpush1.msra.mxu0 0.0
        %2351 = vmatprep.subr.mxu0 0.0
        %2352 = vmatpush1.msra.mxu0 0.0
        %2353 = vmatprep.subr.mxu0 0.0
        %2354 = vmatpush1.msra.mxu0 0.0
        %2355 = vmatprep.subr.mxu0 0.0
        %2356 = vmatpush1.msra.mxu0 0.0
        %2357 = vmatprep.subr.mxu0 0.0
        %2358 = vmatpush1.msra.mxu0 0.0
        %2359 = vmatprep.subr.mxu0 0.0
        %2360 = vmatpush1.msra.mxu0 0.0
        %2361 = vmatprep.subr.mxu0 0.0
        %2362 = vmatpush1.msra.mxu0 0.0
        %2363 = vmatprep.subr.mxu0 0.0
        %2364 = vmatpush1.msra.mxu0 0.0
        %2365 = vmatprep.subr.mxu0 0.0
        %2366 = vmatpush1.msra.mxu0 0.0
        %2367 = vmatprep.subr.mxu0 0.0
        %2368 = vmatpush1.msra.mxu0 0.0
        %2369 = vmatprep.subr.mxu0 0.0
        %2370 = vmatpush1.msra.mxu0 0.0
        %2371 = vmatprep.subr.mxu0 0.0
        %2372 = vmatpush1.msra.mxu0 0.0
        %2373 = vmatprep.mubr.f32.mxu0 0.0
        %2374 = vmatmul.mubr.f32.gmra.mrb[0].mxu0 %v2236
        %v2375 = vpop.f32.mrb[0].mxu0
        %v2376 = vadd.f32 0.0, %v2375
        %v2377 = vpop.f32.mrb[0].mxu0
        %v2378 = vadd.f32 0.0, %v2377
        %2379 = vdwg.mxu0
        %v2380 = vmul.f32 %v1858, 0.5
        %v2381 = vmul.f32 %v1867, 0.5
        %v2382 = vmul.f32 %v1876, 0.5
        %v2383 = vmul.f32 %v1885, 0.5
        %v2384 = vadd.f32 %v1496, %v2380
        %v2385 = vadd.f32 %v1498, %v2381
        %v2386 = vadd.f32 %v1782, %v2382
        %v2387 = vadd.f32 %v1784, %v2383
        %v2388 = vadd.f32 %v2384, %v2305
        %v2389 = vadd.f32 %v2385, %v2307
        %v2390 = vadd.f32 %v2386, %v2376
        %v2391 = vadd.f32 %v2387, %v2378
        %s2392 = sld [smem:[#allocation2]]
        %v2393 = vstv %s2392
        %v2394 = vadd.f32 %v2388, %v2393
        %v2395 = vadd.f32 %v2389, %v2393
        %v2396 = vadd.f32 %v2390, %v2393
        %v2397 = vadd.f32 %v2391, %v2393
        %v2398 = vxor.u32 %v2394, 2147483648
        %v2399 = vxor.u32 %v2395, 2147483648
        %v2400 = vxor.u32 %v2396, 2147483648
        %v2401 = vxor.u32 %v2397, 2147483648
        %v2402 = vmul.f32 %v2398, 1.442695
        %v2403 = vpow.pop %v2402
        %v2404 = vmul.f32 %v2399, 1.442695
        %v2405 = vpow.pop %v2404
        %v2406 = vmul.f32 %v2400, 1.442695
        %v2407 = vpow.pop %v2406
        %v2408 = vmul.f32 %v2401, 1.442695
        %v2409 = vpow.pop %v2408
        %v2410 = vadd.f32 %v2403, 1.0
        %v2411 = vadd.f32 %v2405, 1.0
        %v2412 = vadd.f32 %v2407, 1.0
        %v2413 = vadd.f32 %v2409, 1.0
        %v2414 = vrcp.pop %v2410
        %v2415 = vmul.f32 1.0, %v2414
        %v2416 = vrcp.pop %v2411
        %v2417 = vmul.f32 1.0, %v2416
        %v2418 = vrcp.pop %v2412
        %v2419 = vmul.f32 1.0, %v2418
        %v2420 = vrcp.pop %v2413
        %v2421 = vmul.f32 1.0, %v2420
        %v2426 = vcombine.low %v2415, %v2417
        %v2427 = vcombine.low %v2419, %v2421
        %v2429 = vunpack.c.l.s4 1966171168
        %v2430 = vunpack.c.0.s8 %v2429
        %v2431 = vlaneseq
        %v2432 = vshrl.u32 %v2431, 7
        %v2433 = vsub.s32 %v2430, %v2432
        %v2434 = vrot.slane %v2426, %v2433
        %v2436 = vunpack.c.l.s4 1966171168
        %v2437 = vunpack.c.0.s8 %v2436
        %v2438 = vlaneseq
        %v2439 = vshrl.u32 %v2438, 7
        %v2440 = vsub.s32 %v2437, %v2439
        %v2441 = vrot.slane %v2427, %v2440
        %v2442 = vcombine.low %v2434, %v2441
        %v2444 = vunpack.c.l.s4 1966171168
        %v2445 = vunpack.c.0.s8 %v2444
        %v2446 = vlaneseq
        %v2447 = vshrl.u32 %v2446, 7
        %v2448 = vsub.s32 %v2445, %v2447
        %v2449 = vrot.slane %v2442, %v2448
        %v2451 = vlaneseq
        %vm2452 = vcmp.ge.s32.totalorder %v2451, 0
        %vm2453 = vcmp.lt.s32.totalorder %v2451, 512
        %vm2454 = vmand %vm2452, %vm2453
        %2455 = vst.msk [vmem:[%s288] sm:$0xf] %vm2454, %v2449
        %s2456 = sand.u32 %s183, 1
        %s2457 = scalar_lea.sflag [#allocation5], %s2456
        %s2458 = sand.u32 %s183, 1
        %s2459 = smul.addr %s2458, 4
        %s2460 = scalar_lea.vmem [#allocation6], %s2459
        // Predicated region
        $region53: #{tpu_custom_call.1} parent=47 // pred_check
          %p2461 = pneg %p193
        $region54: #{tpu_custom_call.1} parent=47 // pred_check_branch
          %2463 = sbr.rel (%p2461) target = $region56
        $region55: #{tpu_custom_call.1} parent=47 // pred_region
          %s2465 = ssub.s32 64, 64
          %2466 = vsyncadd %s2457, %s2465
          %s2467 = smul.addr %s23, 4
          %s2468 = smul.addr %s2467, 16
          %s2469 = scalar_lea.hbm %s7, %s2468
          %s2471 = sshll.u32 %s2460, 4
          %s2472 = int_to_ptr.vmem [resolvable:$true] %s2471
          %2474 = dma.vmem_to_hbm [thread:$0]  %s2472, 64, %s2469, %s2457
        $region56: #{tpu_custom_call.1} parent=47 // pred_fallthru
          _
      $region48: #{tpu_custom_call.1} parent=5 // pred_fallthru
        _
      %p2475 = scmp.le.s32.totalorder 2, %s18
      // Predicated region
      $region57: #{tpu_custom_call.1} parent=5 // pred_check
        %p2476 = pneg %p2475
      $region58: #{tpu_custom_call.1} parent=5 // pred_check_branch
        %2478 = sbr.rel (%p2476) target = $region60
      $region59: #{tpu_custom_call.1} parent=5 // pred_region
        %s2479 = ssub.s32 %s18, 2
        // Predicated region
        $region61: #{tpu_custom_call.1} parent=59 // pred_check
          %p2480 = pneg %p199
        $region62: #{tpu_custom_call.1} parent=59 // pred_check_branch
          %2482 = sbr.rel (%p2480) target = $region64
        $region63: #{tpu_custom_call.1} parent=59 // pred_region
          %s2483 = sand.u32 %s184, 1
          %s2484 = scalar_lea.sflag [#allocation5], %s2483
          %s2485 = sand.u32 %s184, 1
          %s2486 = smul.addr %s2485, 4
          %s2487 = scalar_lea.vmem [#allocation6], %s2486
          %2488 = dma.done %s2484, 64
        $region64: #{tpu_custom_call.1} parent=59 // pred_fallthru
          _
      $region60: #{tpu_custom_call.1} parent=5 // pred_fallthru
        _
    $region6: #{tpu_custom_call.1} parent=1 // loop_footer
      %s22 = sadd.s32 1, %s18
    $region7: #{tpu_custom_call.1} parent=1 // loop_footer_branch
      %17 = sbr.rel target = $region3
    $region8: #{tpu_custom_call.1} parent=1 // loop_exit
      _
    %2489 = vsyncpa [#allocation4], 1
    %s2490 = scalar_lea.sflag [#allocation4], 1
    %2491 = vsyncpa %s2490, 1
    %2492 = vsyncpa [#allocation5], 1
    %s2493 = scalar_lea.sflag [#allocation5], 1
    %2494 = vsyncpa %s2493, 1

</llo_original>
